<compile_context>
chip_gen: v5e
topology: v5e:2x2
jax: 0.10.0
libtpu: 0.0.40
codegen_flags: <defaults>
</compile_context>

<pallas_src>
import jax
import jax.numpy as jnp
from jax.experimental import pallas as pl
from jax.experimental.pallas import tpu as pltpu


def sa_kernel(x_ref, w1f_ref, b1f_ref, w2t_ref, b2f_ref, o_ref):
    # x_ref:   (B, C, in_dim)
    # w1f_ref: (in_dim, num*hid)   w1f[i, d*hid + j] = w1[i, j, d]
    # b1f_ref: (1, num*hid)
    # w2t_ref: (num, hid, in_dim)  w2t[d, j, i]      = w2[j, i, d]
    # b2f_ref: (1, num*in_dim)     b2f[0, d*in_dim+i] = b2[0, i, d]
    # o_ref:   (B, num*in_dim)     o[b, d*in_dim+i]   = out[b, i, d]
    num, hid, in_dim = w2t_ref.shape

    # max over the channel axis, computed once per call (single grid step).
    mask = jnp.max(x_ref[...], axis=1).astype(w1f_ref.dtype)          # (B, in_dim)

    # Fused first GEMM across all heads: (B, in_dim) @ (in_dim, num*hid).
    h = jnp.dot(mask, w1f_ref[...],
                preferred_element_type=jnp.float32) + b1f_ref[...]     # (B, num*hid) f32

    # Second GEMM: unrolled over the (static, small) head axis.
    for d in range(num):
        h_d = h[:, d * hid:(d + 1) * hid].astype(w2t_ref.dtype)        # (B, hid)
        out_d = jnp.dot(h_d, w2t_ref[d],
                        preferred_element_type=jnp.float32)            # (B, in_dim)
        out_d = out_d + b2f_ref[:, d * in_dim:(d + 1) * in_dim]
        o_ref[:, d * in_dim:(d + 1) * in_dim] = out_d.astype(o_ref.dtype)


def prepare_sa_params(w1, b1, w2, b2, dtype=None):
    """One-time re-layout from the PyTorch parameter layout to the fused kernel
    layout.  Do this at init / checkpoint-load time, not per forward.
      w1: (in_dim, hid, num)  b1: (1, hid, num)
      w2: (hid, in_dim, num)  b2: (1, in_dim, num)
    Optionally cast to `dtype` (e.g. jnp.bfloat16 on v6e/v7x)."""
    in_dim, hid, num = w1.shape
    w1f = jnp.transpose(w1, (0, 2, 1)).reshape(in_dim, num * hid)   # [i, d*hid+j]
    b1f = jnp.transpose(b1, (0, 2, 1)).reshape(1, num * hid)
    w2t = jnp.transpose(w2, (2, 0, 1))                              # (num, hid, in_dim)
    b2f = jnp.transpose(b2, (0, 2, 1)).reshape(1, num * in_dim)
    if dtype is not None:
        w1f, b1f, w2t, b2f = (a.astype(dtype) for a in (w1f, b1f, w2t, b2f))
    return w1f, b1f, w2t, b2f


def sa_forward(x, w1f, b1f, w2t, b2f):
    """x: (B, C, in_dim); prepared params from prepare_sa_params.
       Returns (B, in_dim, num), matching the PyTorch module."""
    B, C, in_dim = x.shape
    num, hid, _ = w2t.shape

    out_f = pl.pallas_call(
        sa_kernel,
        out_shape=jax.ShapeDtypeStruct((B, num * in_dim), x.dtype),
        grid_spec=pltpu.PrefetchScalarGridSpec(
            num_scalar_prefetch=0,
            grid=(1,),                                   # single step: all-resident
            in_specs=[
                pl.BlockSpec((B, C, in_dim), lambda i: (0, 0, 0)),
                pl.BlockSpec((in_dim, num * hid), lambda i: (0, 0)),
                pl.BlockSpec((1, num * hid), lambda i: (0, 0)),
                pl.BlockSpec((num, hid, in_dim), lambda i: (0, 0, 0)),
                pl.BlockSpec((1, num * in_dim), lambda i: (0, 0)),
            ],
            out_specs=pl.BlockSpec((B, num * in_dim), lambda i: (0, 0)),
        ),
        compiler_params=pltpu.CompilerParams(
            dimension_semantics=("arbitrary",)),
    )(x, w1f, b1f, w2t, b2f)

    # Cheap layout glue back to the PyTorch output layout (B, in_dim, num).
    return jnp.transpose(out_f.reshape(B, num, in_dim), (0, 2, 1))


def init_sa_params(key, in_dim, num=8, dtype=jnp.float32):
    """Parameters in the original PyTorch layout (normal std=0.005, bias 0.1)."""
    hid = in_dim // 2
    k1, k2 = jax.random.split(key)
    w1 = 0.005 * jax.random.normal(k1, (in_dim, hid, num), dtype)
    b1 = jnp.full((1, hid, num), 0.1, dtype)
    w2 = 0.005 * jax.random.normal(k2, (hid, in_dim, num), dtype)
    b2 = jnp.full((1, in_dim, num), 0.1, dtype)
    return w1, b1, w2, b2


def sa_reference(x, w1, b1, w2, b2):
    mask = jnp.max(x, axis=1)                                  # (B, in_dim)
    h = jnp.einsum('bi,ijd->bjd', mask, w1) + b1               # (B, hid, num)
    return jnp.einsum('bjd,jid->bid', h, w2) + b2              # (B, in_dim, num)


if __name__ == "__main__":
    B, C, in_dim, num = 2, 4, 256, 8            # 16x16 spatial map flattened -> in_dim=256
    key = jax.random.PRNGKey(0)
    kx, kp = jax.random.split(key)
    x = jax.random.normal(kx, (B, C, in_dim), jnp.float32)
    w1, b1, w2, b2 = init_sa_params(kp, in_dim, num)

    # One-time parameter preparation (use dtype=jnp.bfloat16 on v6e/v7x for
    # half the weight HBM traffic; f32 here for an exact reference check).
    w1f, b1f, w2t, b2f = prepare_sa_params(w1, b1, w2, b2, dtype=None)

    out = sa_forward(x, w1f, b1f, w2t, b2f)
    out = jax.block_until_ready(out)

    ref = sa_reference(x, w1, b1, w2, b2)
    assert out.shape == (B, in_dim, num), out.shape
    assert jnp.allclose(out, ref, atol=1e-5, rtol=1e-5), float(jnp.max(jnp.abs(out - ref)))
    print("KERNEL_OK")
</pallas_src>

<mosaic_0001>
module attributes {stable_mosaic.version = 11 : i64} {
  func.func @sa_kernel(%arg0: i32, %arg1: memref<2x4x256xf32, #tpu.memory_space<vmem>>, %arg2: memref<256x1024xf32, #tpu.memory_space<vmem>>, %arg3: memref<1x1024xf32, #tpu.memory_space<vmem>>, %arg4: memref<8x128x256xf32, #tpu.memory_space<vmem>>, %arg5: memref<1x2048xf32, #tpu.memory_space<vmem>>, %arg6: memref<2x2048xf32, #tpu.memory_space<vmem>>) attributes {dimension_semantics = [#tpu.dimension_semantics<arbitrary>], iteration_bounds = array<i64: 1>, scalar_prefetch = 0 : i64, scratch_operands = 0 : i64, tpu.core_type = #tpu.core_type<tc>, window_params = [{pipeline_mode = #tpu.pipeline_mode<synchronous>, transform_indices = @transform_0, window_bounds = array<i64: 2, 4, 256>}, {pipeline_mode = #tpu.pipeline_mode<synchronous>, transform_indices = @transform_1, window_bounds = array<i64: 256, 1024>}, {pipeline_mode = #tpu.pipeline_mode<synchronous>, transform_indices = @transform_2, window_bounds = array<i64: 1, 1024>}, {pipeline_mode = #tpu.pipeline_mode<synchronous>, transform_indices = @transform_3, window_bounds = array<i64: 8, 128, 256>}, {pipeline_mode = #tpu.pipeline_mode<synchronous>, transform_indices = @transform_4, window_bounds = array<i64: 1, 2048>}, {pipeline_mode = #tpu.pipeline_mode<synchronous>, transform_indices = @transform_5, window_bounds = array<i64: 2, 2048>}]} {
    %c0 = arith.constant 0 : index
    %c0_0 = arith.constant 0 : index
    %c0_1 = arith.constant 0 : index
    %0 = vector.load %arg1[%c0, %c0_0, %c0_1] : memref<2x4x256xf32, #tpu.memory_space<vmem>>, vector<2x4x256xf32>
    %cst = arith.constant dense<0xFF800000> : vector<2x256xf32>
    %1 = vector.multi_reduction <maximumf>, %0, %cst [1] : vector<2x4x256xf32> to vector<2x256xf32>
    %c0_2 = arith.constant 0 : index
    %c0_3 = arith.constant 0 : index
    %2 = vector.load %arg2[%c0_2, %c0_3] : memref<256x1024xf32, #tpu.memory_space<vmem>>, vector<256x1024xf32>
    %cst_4 = arith.constant dense<0.000000e+00> : vector<2x1024xf32>
    %3 = tpu.matmul %1, %2, %cst_4 {dimension_numbers = #tpu.dot_dimension_numbers<[1], [0], [0], [1], [0, 0, 1, 1], [], []>} : vector<2x256xf32>, vector<256x1024xf32>, vector<2x1024xf32> -> vector<2x1024xf32>
    %c0_5 = arith.constant 0 : index
    %c0_6 = arith.constant 0 : index
    %4 = vector.load %arg3[%c0_5, %c0_6] : memref<1x1024xf32, #tpu.memory_space<vmem>>, vector<1x1024xf32>
    %5 = vector.broadcast %4 : vector<1x1024xf32> to vector<2x1024xf32>
    %6 = arith.addf %3, %5 : vector<2x1024xf32>
    %7 = vector.extract_strided_slice %6 {offsets = [0, 0], sizes = [2, 128], strides = [1, 1]} : vector<2x1024xf32> to vector<2x128xf32>
    %c0_7 = arith.constant 0 : index
    %c0_8 = arith.constant 0 : index
    %c0_9 = arith.constant 0 : index
    %8 = vector.load %arg4[%c0_7, %c0_8, %c0_9] : memref<8x128x256xf32, #tpu.memory_space<vmem>>, vector<1x128x256xf32>
    %9 = vector.shape_cast %8 : vector<1x128x256xf32> to vector<128x256xf32>
    %cst_10 = arith.constant dense<0.000000e+00> : vector<2x256xf32>
    %10 = tpu.matmul %7, %9, %cst_10 {dimension_numbers = #tpu.dot_dimension_numbers<[1], [0], [0], [1], [0, 0, 1, 1], [], []>} : vector<2x128xf32>, vector<128x256xf32>, vector<2x256xf32> -> vector<2x256xf32>
    %c0_11 = arith.constant 0 : index
    %c0_12 = arith.constant 0 : index
    %11 = vector.load %arg5[%c0_11, %c0_12] : memref<1x2048xf32, #tpu.memory_space<vmem>>, vector<1x256xf32>
    %12 = vector.broadcast %11 : vector<1x256xf32> to vector<2x256xf32>
    %13 = arith.addf %10, %12 : vector<2x256xf32>
    %c0_13 = arith.constant 0 : index
    %c0_14 = arith.constant 0 : index
    %14 = vector.load %arg6[%c0_13, %c0_14] : memref<2x2048xf32, #tpu.memory_space<vmem>>, vector<2x256xf32>
    tpu.vector_store %arg6[%c0_13, %c0_14], %13 {strides = array<i32>} : memref<2x2048xf32, #tpu.memory_space<vmem>>, vector<2x256xf32>,
    %15 = vector.extract_strided_slice %6 {offsets = [0, 128], sizes = [2, 128], strides = [1, 1]} : vector<2x1024xf32> to vector<2x128xf32>
    %c1 = arith.constant 1 : index
    %c0_15 = arith.constant 0 : index
    %c0_16 = arith.constant 0 : index
    %16 = vector.load %arg4[%c1, %c0_15, %c0_16] : memref<8x128x256xf32, #tpu.memory_space<vmem>>, vector<1x128x256xf32>
    %17 = vector.shape_cast %16 : vector<1x128x256xf32> to vector<128x256xf32>
    %cst_17 = arith.constant dense<0.000000e+00> : vector<2x256xf32>
    %18 = tpu.matmul %15, %17, %cst_17 {dimension_numbers = #tpu.dot_dimension_numbers<[1], [0], [0], [1], [0, 0, 1, 1], [], []>} : vector<2x128xf32>, vector<128x256xf32>, vector<2x256xf32> -> vector<2x256xf32>
    %c0_18 = arith.constant 0 : index
    %c256 = arith.constant 256 : index
    %19 = vector.load %arg5[%c0_18, %c256] : memref<1x2048xf32, #tpu.memory_space<vmem>>, vector<1x256xf32>
    %20 = vector.broadcast %19 : vector<1x256xf32> to vector<2x256xf32>
    %21 = arith.addf %18, %20 : vector<2x256xf32>
    %c0_19 = arith.constant 0 : index
    %c256_20 = arith.constant 256 : index
    %22 = vector.load %arg6[%c0_19, %c256_20] : memref<2x2048xf32, #tpu.memory_space<vmem>>, vector<2x256xf32>
    tpu.vector_store %arg6[%c0_19, %c256_20], %21 {strides = array<i32>} : memref<2x2048xf32, #tpu.memory_space<vmem>>, vector<2x256xf32>,
    %23 = vector.extract_strided_slice %6 {offsets = [0, 256], sizes = [2, 128], strides = [1, 1]} : vector<2x1024xf32> to vector<2x128xf32>
    %c2 = arith.constant 2 : index
    %c0_21 = arith.constant 0 : index
    %c0_22 = arith.constant 0 : index
    %24 = vector.load %arg4[%c2, %c0_21, %c0_22] : memref<8x128x256xf32, #tpu.memory_space<vmem>>, vector<1x128x256xf32>
    %25 = vector.shape_cast %24 : vector<1x128x256xf32> to vector<128x256xf32>
    %cst_23 = arith.constant dense<0.000000e+00> : vector<2x256xf32>
    %26 = tpu.matmul %23, %25, %cst_23 {dimension_numbers = #tpu.dot_dimension_numbers<[1], [0], [0], [1], [0, 0, 1, 1], [], []>} : vector<2x128xf32>, vector<128x256xf32>, vector<2x256xf32> -> vector<2x256xf32>
    %c0_24 = arith.constant 0 : index
    %c512 = arith.constant 512 : index
    %27 = vector.load %arg5[%c0_24, %c512] : memref<1x2048xf32, #tpu.memory_space<vmem>>, vector<1x256xf32>
    %28 = vector.broadcast %27 : vector<1x256xf32> to vector<2x256xf32>
    %29 = arith.addf %26, %28 : vector<2x256xf32>
    %c0_25 = arith.constant 0 : index
    %c512_26 = arith.constant 512 : index
    %30 = vector.load %arg6[%c0_25, %c512_26] : memref<2x2048xf32, #tpu.memory_space<vmem>>, vector<2x256xf32>
    tpu.vector_store %arg6[%c0_25, %c512_26], %29 {strides = array<i32>} : memref<2x2048xf32, #tpu.memory_space<vmem>>, vector<2x256xf32>,
    %31 = vector.extract_strided_slice %6 {offsets = [0, 384], sizes = [2, 128], strides = [1, 1]} : vector<2x1024xf32> to vector<2x128xf32>
    %c3 = arith.constant 3 : index
    %c0_27 = arith.constant 0 : index
    %c0_28 = arith.constant 0 : index
    %32 = vector.load %arg4[%c3, %c0_27, %c0_28] : memref<8x128x256xf32, #tpu.memory_space<vmem>>, vector<1x128x256xf32>
    %33 = vector.shape_cast %32 : vector<1x128x256xf32> to vector<128x256xf32>
    %cst_29 = arith.constant dense<0.000000e+00> : vector<2x256xf32>
    %34 = tpu.matmul %31, %33, %cst_29 {dimension_numbers = #tpu.dot_dimension_numbers<[1], [0], [0], [1], [0, 0, 1, 1], [], []>} : vector<2x128xf32>, vector<128x256xf32>, vector<2x256xf32> -> vector<2x256xf32>
    %c0_30 = arith.constant 0 : index
    %c768 = arith.constant 768 : index
    %35 = vector.load %arg5[%c0_30, %c768] : memref<1x2048xf32, #tpu.memory_space<vmem>>, vector<1x256xf32>
    %36 = vector.broadcast %35 : vector<1x256xf32> to vector<2x256xf32>
    %37 = arith.addf %34, %36 : vector<2x256xf32>
    %c0_31 = arith.constant 0 : index
    %c768_32 = arith.constant 768 : index
    %38 = vector.load %arg6[%c0_31, %c768_32] : memref<2x2048xf32, #tpu.memory_space<vmem>>, vector<2x256xf32>
    tpu.vector_store %arg6[%c0_31, %c768_32], %37 {strides = array<i32>} : memref<2x2048xf32, #tpu.memory_space<vmem>>, vector<2x256xf32>,
    %39 = vector.extract_strided_slice %6 {offsets = [0, 512], sizes = [2, 128], strides = [1, 1]} : vector<2x1024xf32> to vector<2x128xf32>
    %c4 = arith.constant 4 : index
    %c0_33 = arith.constant 0 : index
    %c0_34 = arith.constant 0 : index
    %40 = vector.load %arg4[%c4, %c0_33, %c0_34] : memref<8x128x256xf32, #tpu.memory_space<vmem>>, vector<1x128x256xf32>
    %41 = vector.shape_cast %40 : vector<1x128x256xf32> to vector<128x256xf32>
    %cst_35 = arith.constant dense<0.000000e+00> : vector<2x256xf32>
    %42 = tpu.matmul %39, %41, %cst_35 {dimension_numbers = #tpu.dot_dimension_numbers<[1], [0], [0], [1], [0, 0, 1, 1], [], []>} : vector<2x128xf32>, vector<128x256xf32>, vector<2x256xf32> -> vector<2x256xf32>
    %c0_36 = arith.constant 0 : index
    %c1024 = arith.constant 1024 : index
    %43 = vector.load %arg5[%c0_36, %c1024] : memref<1x2048xf32, #tpu.memory_space<vmem>>, vector<1x256xf32>
    %44 = vector.broadcast %43 : vector<1x256xf32> to vector<2x256xf32>
    %45 = arith.addf %42, %44 : vector<2x256xf32>
    %c0_37 = arith.constant 0 : index
    %c1024_38 = arith.constant 1024 : index
    %46 = vector.load %arg6[%c0_37, %c1024_38] : memref<2x2048xf32, #tpu.memory_space<vmem>>, vector<2x256xf32>
    tpu.vector_store %arg6[%c0_37, %c1024_38], %45 {strides = array<i32>} : memref<2x2048xf32, #tpu.memory_space<vmem>>, vector<2x256xf32>,
    %47 = vector.extract_strided_slice %6 {offsets = [0, 640], sizes = [2, 128], strides = [1, 1]} : vector<2x1024xf32> to vector<2x128xf32>
    %c5 = arith.constant 5 : index
    %c0_39 = arith.constant 0 : index
    %c0_40 = arith.constant 0 : index
    %48 = vector.load %arg4[%c5, %c0_39, %c0_40] : memref<8x128x256xf32, #tpu.memory_space<vmem>>, vector<1x128x256xf32>
    %49 = vector.shape_cast %48 : vector<1x128x256xf32> to vector<128x256xf32>
    %cst_41 = arith.constant dense<0.000000e+00> : vector<2x256xf32>
    %50 = tpu.matmul %47, %49, %cst_41 {dimension_numbers = #tpu.dot_dimension_numbers<[1], [0], [0], [1], [0, 0, 1, 1], [], []>} : vector<2x128xf32>, vector<128x256xf32>, vector<2x256xf32> -> vector<2x256xf32>
    %c0_42 = arith.constant 0 : index
    %c1280 = arith.constant 1280 : index
    %51 = vector.load %arg5[%c0_42, %c1280] : memref<1x2048xf32, #tpu.memory_space<vmem>>, vector<1x256xf32>
    %52 = vector.broadcast %51 : vector<1x256xf32> to vector<2x256xf32>
    %53 = arith.addf %50, %52 : vector<2x256xf32>
    %c0_43 = arith.constant 0 : index
    %c1280_44 = arith.constant 1280 : index
    %54 = vector.load %arg6[%c0_43, %c1280_44] : memref<2x2048xf32, #tpu.memory_space<vmem>>, vector<2x256xf32>
    tpu.vector_store %arg6[%c0_43, %c1280_44], %53 {strides = array<i32>} : memref<2x2048xf32, #tpu.memory_space<vmem>>, vector<2x256xf32>,
    %55 = vector.extract_strided_slice %6 {offsets = [0, 768], sizes = [2, 128], strides = [1, 1]} : vector<2x1024xf32> to vector<2x128xf32>
    %c6 = arith.constant 6 : index
    %c0_45 = arith.constant 0 : index
    %c0_46 = arith.constant 0 : index
    %56 = vector.load %arg4[%c6, %c0_45, %c0_46] : memref<8x128x256xf32, #tpu.memory_space<vmem>>, vector<1x128x256xf32>
    %57 = vector.shape_cast %56 : vector<1x128x256xf32> to vector<128x256xf32>
    %cst_47 = arith.constant dense<0.000000e+00> : vector<2x256xf32>
    %58 = tpu.matmul %55, %57, %cst_47 {dimension_numbers = #tpu.dot_dimension_numbers<[1], [0], [0], [1], [0, 0, 1, 1], [], []>} : vector<2x128xf32>, vector<128x256xf32>, vector<2x256xf32> -> vector<2x256xf32>
    %c0_48 = arith.constant 0 : index
    %c1536 = arith.constant 1536 : index
    %59 = vector.load %arg5[%c0_48, %c1536] : memref<1x2048xf32, #tpu.memory_space<vmem>>, vector<1x256xf32>
    %60 = vector.broadcast %59 : vector<1x256xf32> to vector<2x256xf32>
    %61 = arith.addf %58, %60 : vector<2x256xf32>
    %c0_49 = arith.constant 0 : index
    %c1536_50 = arith.constant 1536 : index
    %62 = vector.load %arg6[%c0_49, %c1536_50] : memref<2x2048xf32, #tpu.memory_space<vmem>>, vector<2x256xf32>
    tpu.vector_store %arg6[%c0_49, %c1536_50], %61 {strides = array<i32>} : memref<2x2048xf32, #tpu.memory_space<vmem>>, vector<2x256xf32>,
    %63 = vector.extract_strided_slice %6 {offsets = [0, 896], sizes = [2, 128], strides = [1, 1]} : vector<2x1024xf32> to vector<2x128xf32>
    %c7 = arith.constant 7 : index
    %c0_51 = arith.constant 0 : index
    %c0_52 = arith.constant 0 : index
    %64 = vector.load %arg4[%c7, %c0_51, %c0_52] : memref<8x128x256xf32, #tpu.memory_space<vmem>>, vector<1x128x256xf32>
    %65 = vector.shape_cast %64 : vector<1x128x256xf32> to vector<128x256xf32>
    %cst_53 = arith.constant dense<0.000000e+00> : vector<2x256xf32>
    %66 = tpu.matmul %63, %65, %cst_53 {dimension_numbers = #tpu.dot_dimension_numbers<[1], [0], [0], [1], [0, 0, 1, 1], [], []>} : vector<2x128xf32>, vector<128x256xf32>, vector<2x256xf32> -> vector<2x256xf32>
    %c0_54 = arith.constant 0 : index
    %c1792 = arith.constant 1792 : index
    %67 = vector.load %arg5[%c0_54, %c1792] : memref<1x2048xf32, #tpu.memory_space<vmem>>, vector<1x256xf32>
    %68 = vector.broadcast %67 : vector<1x256xf32> to vector<2x256xf32>
    %69 = arith.addf %66, %68 : vector<2x256xf32>
    %c0_55 = arith.constant 0 : index
    %c1792_56 = arith.constant 1792 : index
    %70 = vector.load %arg6[%c0_55, %c1792_56] : memref<2x2048xf32, #tpu.memory_space<vmem>>, vector<2x256xf32>
    tpu.vector_store %arg6[%c0_55, %c1792_56], %69 {strides = array<i32>} : memref<2x2048xf32, #tpu.memory_space<vmem>>, vector<2x256xf32>,
    return
  }
  func.func @transform_0(%arg0: i32) -> (i32, i32, i32) {
    %c0_i32 = arith.constant 0 : i32
    %c0_i32_0 = arith.constant 0 : i32
    %c0_i32_1 = arith.constant 0 : i32
    %c0_i32_2 = arith.constant 0 : i32
    return %c0_i32, %c0_i32_0, %c0_i32_1 : i32, i32, i32
  }
  func.func @transform_1(%arg0: i32) -> (i32, i32) {
    %c0_i32 = arith.constant 0 : i32
    %c0_i32_0 = arith.constant 0 : i32
    %c0_i32_1 = arith.constant 0 : i32
    return %c0_i32, %c0_i32_0 : i32, i32
  }
  func.func @transform_2(%arg0: i32) -> (i32, i32) {
    %c0_i32 = arith.constant 0 : i32
    %c0_i32_0 = arith.constant 0 : i32
    %c0_i32_1 = arith.constant 0 : i32
    return %c0_i32, %c0_i32_0 : i32, i32
  }
  func.func @transform_3(%arg0: i32) -> (i32, i32, i32) {
    %c0_i32 = arith.constant 0 : i32
    %c0_i32_0 = arith.constant 0 : i32
    %c0_i32_1 = arith.constant 0 : i32
    %c0_i32_2 = arith.constant 0 : i32
    return %c0_i32, %c0_i32_0, %c0_i32_1 : i32, i32, i32
  }
  func.func @transform_4(%arg0: i32) -> (i32, i32) {
    %c0_i32 = arith.constant 0 : i32
    %c0_i32_0 = arith.constant 0 : i32
    %c0_i32_1 = arith.constant 0 : i32
    return %c0_i32, %c0_i32_0 : i32, i32
  }
  func.func @transform_5(%arg0: i32) -> (i32, i32) {
    %c0_i32 = arith.constant 0 : i32
    %c0_i32_0 = arith.constant 0 : i32
    %c0_i32_1 = arith.constant 0 : i32
    return %c0_i32, %c0_i32_0 : i32, i32
  }
}

</mosaic_0001>

<llo_original>
// kernel: tpu_custom_call.1
$region0: #{tpu_custom_call.1}
  #allocation0 [shape = 'u32[]', space=smem, size = 0x4, offset = 0x4, fixed_abs, tag = 'smem constant byte address 0x4 - core index']
  #allocation1 [shape = 'u32[72,128]{1,0:T(1,128)}', space=vmem, size = 0x9000, scoped, tag = 'internal scratch']
  %s0 = inlined_call_operand.hbm [shape: f32[2,4,256], index: 0, kind: input, shape index: {}]
  %s1 = inlined_call_operand.hbm [shape: f32[256,1024], index: 1, kind: input, shape index: {}]
  %s2 = inlined_call_operand.hbm [shape: f32[1,1024], index: 2, kind: input, shape index: {}]
  %s3 = inlined_call_operand.hbm [shape: f32[8,128,256], index: 3, kind: input, shape index: {}]
  %s4 = inlined_call_operand.hbm [shape: f32[1,2048], index: 4, kind: input, shape index: {}]
  %s5 = inlined_call_operand.hbm [shape: f32[2,2048], index: 5, kind: output, shape index: {}]
  %s6 = sld [smem:[#allocation0]]
  $region50: #{tpu_custom_call.1} parent=0
    _
  %s8 = ssub.s32 1, %s6
  %s9 = scalar_select 0, %s8, %s6
  $region1: #{tpu_custom_call.1} parent=0
    #allocation2 [shape = 'u8[8192]{0}', space=vmem, size = 0x2000, scoped, tag = 'input window, operand 0, single buffered']
    #allocation3 [shape = 's32[1]{0}', space=sflag, size = 0x4, scoped, tag = 'scoped memory for tpu_custom_call.1']
    #allocation4 [shape = 's32[1]{0}', space=sflag, size = 0x4, scoped, tag = 'scoped memory for tpu_custom_call.1']
    #allocation5 [shape = 'u8[1048576]{0}', space=vmem, size = 0x100000, scoped, tag = 'input window, operand 1, single buffered']
    #allocation6 [shape = 's32[1]{0}', space=sflag, size = 0x4, scoped, tag = 'scoped memory for tpu_custom_call.1']
    #allocation7 [shape = 'u8[4096]{0}', space=vmem, size = 0x1000, scoped, tag = 'input window, operand 2, single buffered']
    #allocation8 [shape = 'u8[1048576]{0}', space=vmem, size = 0x100000, scoped, tag = 'input window, operand 3, single buffered']
    #allocation9 [shape = 's32[1]{0}', space=sflag, size = 0x4, scoped, tag = 'scoped memory for tpu_custom_call.1']
    #allocation10 [shape = 'u8[8192]{0}', space=vmem, size = 0x2000, scoped, tag = 'input window, operand 4, single buffered']
    #allocation11 [shape = 'u8[16384]{0}', space=vmem, size = 0x4000, scoped, tag = 'output window, operand 0, single buffered']
    %10 = vsyncpa [#allocation3], 0
    %11 = vsyncpa [#allocation6], 0
    %12 = vsyncpa [#allocation9], 0
    %13 = vsyncpa [#allocation4], 0
    // Predicated region
    $region2: #{tpu_custom_call.1} parent=1 // pred_check
      _
    $region3: #{tpu_custom_call.1} parent=1 // pred_check_branch
      %15 = sbr.rel (0) target = $region5
    $region4: #{tpu_custom_call.1} parent=1 // pred_region
      %17 = vsyncadd [#allocation3], 0
      %s18 = sshll.u32 %s0, 4
      %s19 = int_to_ptr.hbm [resolvable:$true] %s18
      %s20 = sshll.u32 [#allocation2], 4
      %s21 = int_to_ptr.vmem [resolvable:$true] %s20
      %26 = dma.hbm_to_vmem [thread:$0]  %s19, 256, %s21, [#allocation3], 128, 128, 8
    $region5: #{tpu_custom_call.1} parent=1 // pred_fallthru
      _
    // Predicated region
    $region6: #{tpu_custom_call.1} parent=1 // pred_check
      _
    $region7: #{tpu_custom_call.1} parent=1 // pred_check_branch
      %28 = sbr.rel (0) target = $region9
    $region8: #{tpu_custom_call.1} parent=1 // pred_region
      %30 = vsyncadd [#allocation6], 0
      %s31 = sshll.u32 %s1, 4
      %s32 = int_to_ptr.hbm [resolvable:$true] %s31
      %s33 = sshll.u32 [#allocation5], 4
      %s34 = int_to_ptr.vmem [resolvable:$true] %s33
      %39 = dma.hbm_to_vmem [thread:$0]  %s32, 32768, %s34, [#allocation6], 1024, 1024, 64
    $region9: #{tpu_custom_call.1} parent=1 // pred_fallthru
      _
    // Predicated region
    $region10: #{tpu_custom_call.1} parent=1 // pred_check
      _
    $region11: #{tpu_custom_call.1} parent=1 // pred_check_branch
      %41 = sbr.rel (0) target = $region13
    $region12: #{tpu_custom_call.1} parent=1 // pred_region
      %43 = vsyncadd [#allocation6], 0
      %s45 = sshll.u32 %s2, 4
      %s46 = int_to_ptr.hbm [resolvable:$true] %s45
      %s47 = sshll.u32 [#allocation7], 4
      %s48 = int_to_ptr.vmem [resolvable:$true] %s47
      %50 = dma.hbm_to_vmem [thread:$0]  %s46, 128, %s48, [#allocation6]
    $region13: #{tpu_custom_call.1} parent=1 // pred_fallthru
      _
    // Predicated region
    $region14: #{tpu_custom_call.1} parent=1 // pred_check
      _
    $region15: #{tpu_custom_call.1} parent=1 // pred_check_branch
      %52 = sbr.rel (0) target = $region17
    $region16: #{tpu_custom_call.1} parent=1 // pred_region
      %54 = vsyncadd [#allocation9], 0
      %s55 = sshll.u32 %s3, 4
      %s56 = int_to_ptr.hbm [resolvable:$true] %s55
      %s57 = sshll.u32 [#allocation8], 4
      %s58 = int_to_ptr.vmem [resolvable:$true] %s57
      %63 = dma.hbm_to_vmem [thread:$0]  %s56, 32768, %s58, [#allocation9], 256, 256, 16
    $region17: #{tpu_custom_call.1} parent=1 // pred_fallthru
      _
    // Predicated region
    $region18: #{tpu_custom_call.1} parent=1 // pred_check
      _
    $region19: #{tpu_custom_call.1} parent=1 // pred_check_branch
      %65 = sbr.rel (0) target = $region21
    $region20: #{tpu_custom_call.1} parent=1 // pred_region
      %67 = vsyncadd [#allocation9], 0
      %s69 = sshll.u32 %s4, 4
      %s70 = int_to_ptr.hbm [resolvable:$true] %s69
      %s71 = sshll.u32 [#allocation10], 4
      %s72 = int_to_ptr.vmem [resolvable:$true] %s71
      %74 = dma.hbm_to_vmem [thread:$0]  %s70, 256, %s72, [#allocation9]
    $region21: #{tpu_custom_call.1} parent=1 // pred_fallthru
      _
    // Predicated region
    $region22: #{tpu_custom_call.1} parent=1 // pred_check
      _
    $region23: #{tpu_custom_call.1} parent=1 // pred_check_branch
      %76 = sbr.rel (0) target = $region25
    $region24: #{tpu_custom_call.1} parent=1 // pred_region
      %78 = dma.done [#allocation3], 256
    $region25: #{tpu_custom_call.1} parent=1 // pred_fallthru
      _
    // Predicated region
    $region26: #{tpu_custom_call.1} parent=1 // pred_check
      _
    $region27: #{tpu_custom_call.1} parent=1 // pred_check_branch
      %80 = sbr.rel (0) target = $region29
    $region28: #{tpu_custom_call.1} parent=1 // pred_region
      %82 = dma.done [#allocation6], 32768
    $region29: #{tpu_custom_call.1} parent=1 // pred_fallthru
      _
    // Predicated region
    $region30: #{tpu_custom_call.1} parent=1 // pred_check
      _
    $region31: #{tpu_custom_call.1} parent=1 // pred_check_branch
      %84 = sbr.rel (0) target = $region33
    $region32: #{tpu_custom_call.1} parent=1 // pred_region
      %86 = dma.done [#allocation6], 128
    $region33: #{tpu_custom_call.1} parent=1 // pred_fallthru
      _
    // Predicated region
    $region34: #{tpu_custom_call.1} parent=1 // pred_check
      _
    $region35: #{tpu_custom_call.1} parent=1 // pred_check_branch
      %88 = sbr.rel (0) target = $region37
    $region36: #{tpu_custom_call.1} parent=1 // pred_region
      %90 = dma.done [#allocation9], 32768
    $region37: #{tpu_custom_call.1} parent=1 // pred_fallthru
      _
    // Predicated region
    $region38: #{tpu_custom_call.1} parent=1 // pred_check
      _
    $region39: #{tpu_custom_call.1} parent=1 // pred_check_branch
      %92 = sbr.rel (0) target = $region41
    $region40: #{tpu_custom_call.1} parent=1 // pred_region
      %94 = dma.done [#allocation9], 256
    $region41: #{tpu_custom_call.1} parent=1 // pred_fallthru
      _
    %v95 = vld [vmem:[#allocation2] sm:$0xff]
    %v96 = vld [vmem:[#allocation2 + $0x8] sm:$0xff]
    %99 = vst [vmem:[#allocation1] ss:$2 sm:$0xff] %v95
    %v100 = vld.sshfl [vmem:[#allocation1] sm:$0xff pattern:$0x75316420]
    %v101 = vld.sshfl [vmem:[#allocation1 + $0x8] sm:$0xff pattern:$0x75316420]
    %s102 = scalar_lea.vmem [#allocation1], 16
    %103 = vst [vmem:[%s102] ss:$2 sm:$0xff] %v96
    %v104 = vld.sshfl [vmem:[#allocation1 + $0x10] sm:$0xff pattern:$0x75316420]
    %v105 = vld.sshfl [vmem:[#allocation1 + $0x18] sm:$0xff pattern:$0x75316420]
    %vm110 = vcmask 1043456
    %v111 = vsel %vm110, %v100, -inf
    %v112 = vrot.slane %v111, 4
    %v113 = vmax.f32 %v111, %v112
    %v114 = vrot.slane %v113, 2
    %v115 = vmax.f32 %v113, %v114
    %v116 = vrot.slane %v115, 1
    %v117 = vmax.f32 %v115, %v116
    %v118 = vsel %vm110, %v101, -inf
    %v119 = vrot.slane %v118, 4
    %v120 = vmax.f32 %v118, %v119
    %v121 = vrot.slane %v120, 2
    %v122 = vmax.f32 %v120, %v121
    %v123 = vrot.slane %v122, 1
    %v124 = vmax.f32 %v122, %v123
    %v125 = vsel %vm110, %v104, -inf
    %v126 = vrot.slane %v125, 4
    %v127 = vmax.f32 %v125, %v126
    %v128 = vrot.slane %v127, 2
    %v129 = vmax.f32 %v127, %v128
    %v130 = vrot.slane %v129, 1
    %v131 = vmax.f32 %v129, %v130
    %v132 = vsel %vm110, %v105, -inf
    %v133 = vrot.slane %v132, 4
    %v134 = vmax.f32 %v132, %v133
    %v135 = vrot.slane %v134, 2
    %v136 = vmax.f32 %v134, %v135
    %v137 = vrot.slane %v136, 1
    %v138 = vmax.f32 %v136, %v137
    %v139 = vld [vmem:[#allocation5] sm:$0xff]
    %v140 = vld [vmem:[#allocation5 + $0x8] sm:$0xff]
    %v141 = vld [vmem:[#allocation5 + $0x10] sm:$0xff]
    %v142 = vld [vmem:[#allocation5 + $0x18] sm:$0xff]
    %v143 = vld [vmem:[#allocation5 + $0x20] sm:$0xff]
    %v144 = vld [vmem:[#allocation5 + $0x28] sm:$0xff]
    %v145 = vld [vmem:[#allocation5 + $0x30] sm:$0xff]
    %v146 = vld [vmem:[#allocation5 + $0x38] sm:$0xff]
    %v147 = vld [vmem:[#allocation5 + $0x40] sm:$0xff]
    %v148 = vld [vmem:[#allocation5 + $0x48] sm:$0xff]
    %v149 = vld [vmem:[#allocation5 + $0x50] sm:$0xff]
    %v150 = vld [vmem:[#allocation5 + $0x58] sm:$0xff]
    %v151 = vld [vmem:[#allocation5 + $0x60] sm:$0xff]
    %v152 = vld [vmem:[#allocation5 + $0x68] sm:$0xff]
    %v153 = vld [vmem:[#allocation5 + $0x70] sm:$0xff]
    %v154 = vld [vmem:[#allocation5 + $0x78] sm:$0xff]
    %v155 = vld [vmem:[#allocation5 + $0x80] sm:$0xff]
    %v156 = vld [vmem:[#allocation5 + $0x88] sm:$0xff]
    %v157 = vld [vmem:[#allocation5 + $0x90] sm:$0xff]
    %v158 = vld [vmem:[#allocation5 + $0x98] sm:$0xff]
    %v159 = vld [vmem:[#allocation5 + $0xa0] sm:$0xff]
    %v160 = vld [vmem:[#allocation5 + $0xa8] sm:$0xff]
    %v161 = vld [vmem:[#allocation5 + $0xb0] sm:$0xff]
    %v162 = vld [vmem:[#allocation5 + $0xb8] sm:$0xff]
    %v163 = vld [vmem:[#allocation5 + $0xc0] sm:$0xff]
    %v164 = vld [vmem:[#allocation5 + $0xc8] sm:$0xff]
    %v165 = vld [vmem:[#allocation5 + $0xd0] sm:$0xff]
    %v166 = vld [vmem:[#allocation5 + $0xd8] sm:$0xff]
    %v167 = vld [vmem:[#allocation5 + $0xe0] sm:$0xff]
    %v168 = vld [vmem:[#allocation5 + $0xe8] sm:$0xff]
    %v169 = vld [vmem:[#allocation5 + $0xf0] sm:$0xff]
    %v170 = vld [vmem:[#allocation5 + $0xf8] sm:$0xff]
    %v171 = vld [vmem:[#allocation5 + $0x100] sm:$0xff]
    %v172 = vld [vmem:[#allocation5 + $0x108] sm:$0xff]
    %v173 = vld [vmem:[#allocation5 + $0x110] sm:$0xff]
    %v174 = vld [vmem:[#allocation5 + $0x118] sm:$0xff]
    %v175 = vld [vmem:[#allocation5 + $0x120] sm:$0xff]
    %v176 = vld [vmem:[#allocation5 + $0x128] sm:$0xff]
    %v177 = vld [vmem:[#allocation5 + $0x130] sm:$0xff]
    %v178 = vld [vmem:[#allocation5 + $0x138] sm:$0xff]
    %v179 = vld [vmem:[#allocation5 + $0x140] sm:$0xff]
    %v180 = vld [vmem:[#allocation5 + $0x148] sm:$0xff]
    %v181 = vld [vmem:[#allocation5 + $0x150] sm:$0xff]
    %v182 = vld [vmem:[#allocation5 + $0x158] sm:$0xff]
    %v183 = vld [vmem:[#allocation5 + $0x160] sm:$0xff]
    %v184 = vld [vmem:[#allocation5 + $0x168] sm:$0xff]
    %v185 = vld [vmem:[#allocation5 + $0x170] sm:$0xff]
    %v186 = vld [vmem:[#allocation5 + $0x178] sm:$0xff]
    %v187 = vld [vmem:[#allocation5 + $0x180] sm:$0xff]
    %v188 = vld [vmem:[#allocation5 + $0x188] sm:$0xff]
    %v189 = vld [vmem:[#allocation5 + $0x190] sm:$0xff]
    %v190 = vld [vmem:[#allocation5 + $0x198] sm:$0xff]
    %v191 = vld [vmem:[#allocation5 + $0x1a0] sm:$0xff]
    %v192 = vld [vmem:[#allocation5 + $0x1a8] sm:$0xff]
    %v193 = vld [vmem:[#allocation5 + $0x1b0] sm:$0xff]
    %v194 = vld [vmem:[#allocation5 + $0x1b8] sm:$0xff]
    %v195 = vld [vmem:[#allocation5 + $0x1c0] sm:$0xff]
    %v196 = vld [vmem:[#allocation5 + $0x1c8] sm:$0xff]
    %v197 = vld [vmem:[#allocation5 + $0x1d0] sm:$0xff]
    %v198 = vld [vmem:[#allocation5 + $0x1d8] sm:$0xff]
    %v199 = vld [vmem:[#allocation5 + $0x1e0] sm:$0xff]
    %v200 = vld [vmem:[#allocation5 + $0x1e8] sm:$0xff]
    %v201 = vld [vmem:[#allocation5 + $0x1f0] sm:$0xff]
    %v202 = vld [vmem:[#allocation5 + $0x1f8] sm:$0xff]
    %v203 = vld [vmem:[#allocation5 + $0x200] sm:$0xff]
    %v204 = vld [vmem:[#allocation5 + $0x208] sm:$0xff]
    %v205 = vld [vmem:[#allocation5 + $0x210] sm:$0xff]
    %v206 = vld [vmem:[#allocation5 + $0x218] sm:$0xff]
    %v207 = vld [vmem:[#allocation5 + $0x220] sm:$0xff]
    %v208 = vld [vmem:[#allocation5 + $0x228] sm:$0xff]
    %v209 = vld [vmem:[#allocation5 + $0x230] sm:$0xff]
    %v210 = vld [vmem:[#allocation5 + $0x238] sm:$0xff]
    %v211 = vld [vmem:[#allocation5 + $0x240] sm:$0xff]
    %v212 = vld [vmem:[#allocation5 + $0x248] sm:$0xff]
    %v213 = vld [vmem:[#allocation5 + $0x250] sm:$0xff]
    %v214 = vld [vmem:[#allocation5 + $0x258] sm:$0xff]
    %v215 = vld [vmem:[#allocation5 + $0x260] sm:$0xff]
    %v216 = vld [vmem:[#allocation5 + $0x268] sm:$0xff]
    %v217 = vld [vmem:[#allocation5 + $0x270] sm:$0xff]
    %v218 = vld [vmem:[#allocation5 + $0x278] sm:$0xff]
    %v219 = vld [vmem:[#allocation5 + $0x280] sm:$0xff]
    %v220 = vld [vmem:[#allocation5 + $0x288] sm:$0xff]
    %v221 = vld [vmem:[#allocation5 + $0x290] sm:$0xff]
    %v222 = vld [vmem:[#allocation5 + $0x298] sm:$0xff]
    %v223 = vld [vmem:[#allocation5 + $0x2a0] sm:$0xff]
    %v224 = vld [vmem:[#allocation5 + $0x2a8] sm:$0xff]
    %v225 = vld [vmem:[#allocation5 + $0x2b0] sm:$0xff]
    %v226 = vld [vmem:[#allocation5 + $0x2b8] sm:$0xff]
    %v227 = vld [vmem:[#allocation5 + $0x2c0] sm:$0xff]
    %v228 = vld [vmem:[#allocation5 + $0x2c8] sm:$0xff]
    %v229 = vld [vmem:[#allocation5 + $0x2d0] sm:$0xff]
    %v230 = vld [vmem:[#allocation5 + $0x2d8] sm:$0xff]
    %v231 = vld [vmem:[#allocation5 + $0x2e0] sm:$0xff]
    %v232 = vld [vmem:[#allocation5 + $0x2e8] sm:$0xff]
    %v233 = vld [vmem:[#allocation5 + $0x2f0] sm:$0xff]
    %v234 = vld [vmem:[#allocation5 + $0x2f8] sm:$0xff]
    %v235 = vld [vmem:[#allocation5 + $0x300] sm:$0xff]
    %v236 = vld [vmem:[#allocation5 + $0x308] sm:$0xff]
    %v237 = vld [vmem:[#allocation5 + $0x310] sm:$0xff]
    %v238 = vld [vmem:[#allocation5 + $0x318] sm:$0xff]
    %v239 = vld [vmem:[#allocation5 + $0x320] sm:$0xff]
    %v240 = vld [vmem:[#allocation5 + $0x328] sm:$0xff]
    %v241 = vld [vmem:[#allocation5 + $0x330] sm:$0xff]
    %v242 = vld [vmem:[#allocation5 + $0x338] sm:$0xff]
    %v243 = vld [vmem:[#allocation5 + $0x340] sm:$0xff]
    %v244 = vld [vmem:[#allocation5 + $0x348] sm:$0xff]
    %v245 = vld [vmem:[#allocation5 + $0x350] sm:$0xff]
    %v246 = vld [vmem:[#allocation5 + $0x358] sm:$0xff]
    %v247 = vld [vmem:[#allocation5 + $0x360] sm:$0xff]
    %v248 = vld [vmem:[#allocation5 + $0x368] sm:$0xff]
    %v249 = vld [vmem:[#allocation5 + $0x370] sm:$0xff]
    %v250 = vld [vmem:[#allocation5 + $0x378] sm:$0xff]
    %v251 = vld [vmem:[#allocation5 + $0x380] sm:$0xff]
    %v252 = vld [vmem:[#allocation5 + $0x388] sm:$0xff]
    %v253 = vld [vmem:[#allocation5 + $0x390] sm:$0xff]
    %v254 = vld [vmem:[#allocation5 + $0x398] sm:$0xff]
    %v255 = vld [vmem:[#allocation5 + $0x3a0] sm:$0xff]
    %v256 = vld [vmem:[#allocation5 + $0x3a8] sm:$0xff]
    %v257 = vld [vmem:[#allocation5 + $0x3b0] sm:$0xff]
    %v258 = vld [vmem:[#allocation5 + $0x3b8] sm:$0xff]
    %v259 = vld [vmem:[#allocation5 + $0x3c0] sm:$0xff]
    %v260 = vld [vmem:[#allocation5 + $0x3c8] sm:$0xff]
    %v261 = vld [vmem:[#allocation5 + $0x3d0] sm:$0xff]
    %v262 = vld [vmem:[#allocation5 + $0x3d8] sm:$0xff]
    %v263 = vld [vmem:[#allocation5 + $0x3e0] sm:$0xff]
    %v264 = vld [vmem:[#allocation5 + $0x3e8] sm:$0xff]
    %v265 = vld [vmem:[#allocation5 + $0x3f0] sm:$0xff]
    %v266 = vld [vmem:[#allocation5 + $0x3f8] sm:$0xff]
    %v267 = vld [vmem:[#allocation5 + $0x400] sm:$0xff]
    %v268 = vld [vmem:[#allocation5 + $0x408] sm:$0xff]
    %v269 = vld [vmem:[#allocation5 + $0x410] sm:$0xff]
    %v270 = vld [vmem:[#allocation5 + $0x418] sm:$0xff]
    %v271 = vld [vmem:[#allocation5 + $0x420] sm:$0xff]
    %v272 = vld [vmem:[#allocation5 + $0x428] sm:$0xff]
    %v273 = vld [vmem:[#allocation5 + $0x430] sm:$0xff]
    %v274 = vld [vmem:[#allocation5 + $0x438] sm:$0xff]
    %v275 = vld [vmem:[#allocation5 + $0x440] sm:$0xff]
    %v276 = vld [vmem:[#allocation5 + $0x448] sm:$0xff]
    %v277 = vld [vmem:[#allocation5 + $0x450] sm:$0xff]
    %v278 = vld [vmem:[#allocation5 + $0x458] sm:$0xff]
    %v279 = vld [vmem:[#allocation5 + $0x460] sm:$0xff]
    %v280 = vld [vmem:[#allocation5 + $0x468] sm:$0xff]
    %v281 = vld [vmem:[#allocation5 + $0x470] sm:$0xff]
    %v282 = vld [vmem:[#allocation5 + $0x478] sm:$0xff]
    %v283 = vld [vmem:[#allocation5 + $0x480] sm:$0xff]
    %v284 = vld [vmem:[#allocation5 + $0x488] sm:$0xff]
    %v285 = vld [vmem:[#allocation5 + $0x490] sm:$0xff]
    %v286 = vld [vmem:[#allocation5 + $0x498] sm:$0xff]
    %v287 = vld [vmem:[#allocation5 + $0x4a0] sm:$0xff]
    %v288 = vld [vmem:[#allocation5 + $0x4a8] sm:$0xff]
    %v289 = vld [vmem:[#allocation5 + $0x4b0] sm:$0xff]
    %v290 = vld [vmem:[#allocation5 + $0x4b8] sm:$0xff]
    %v291 = vld [vmem:[#allocation5 + $0x4c0] sm:$0xff]
    %v292 = vld [vmem:[#allocation5 + $0x4c8] sm:$0xff]
    %v293 = vld [vmem:[#allocation5 + $0x4d0] sm:$0xff]
    %v294 = vld [vmem:[#allocation5 + $0x4d8] sm:$0xff]
    %v295 = vld [vmem:[#allocation5 + $0x4e0] sm:$0xff]
    %v296 = vld [vmem:[#allocation5 + $0x4e8] sm:$0xff]
    %v297 = vld [vmem:[#allocation5 + $0x4f0] sm:$0xff]
    %v298 = vld [vmem:[#allocation5 + $0x4f8] sm:$0xff]
    %v299 = vld [vmem:[#allocation5 + $0x500] sm:$0xff]
    %v300 = vld [vmem:[#allocation5 + $0x508] sm:$0xff]
    %v301 = vld [vmem:[#allocation5 + $0x510] sm:$0xff]
    %v302 = vld [vmem:[#allocation5 + $0x518] sm:$0xff]
    %v303 = vld [vmem:[#allocation5 + $0x520] sm:$0xff]
    %v304 = vld [vmem:[#allocation5 + $0x528] sm:$0xff]
    %v305 = vld [vmem:[#allocation5 + $0x530] sm:$0xff]
    %v306 = vld [vmem:[#allocation5 + $0x538] sm:$0xff]
    %v307 = vld [vmem:[#allocation5 + $0x540] sm:$0xff]
    %v308 = vld [vmem:[#allocation5 + $0x548] sm:$0xff]
    %v309 = vld [vmem:[#allocation5 + $0x550] sm:$0xff]
    %v310 = vld [vmem:[#allocation5 + $0x558] sm:$0xff]
    %v311 = vld [vmem:[#allocation5 + $0x560] sm:$0xff]
    %v312 = vld [vmem:[#allocation5 + $0x568] sm:$0xff]
    %v313 = vld [vmem:[#allocation5 + $0x570] sm:$0xff]
    %v314 = vld [vmem:[#allocation5 + $0x578] sm:$0xff]
    %v315 = vld [vmem:[#allocation5 + $0x580] sm:$0xff]
    %v316 = vld [vmem:[#allocation5 + $0x588] sm:$0xff]
    %v317 = vld [vmem:[#allocation5 + $0x590] sm:$0xff]
    %v318 = vld [vmem:[#allocation5 + $0x598] sm:$0xff]
    %v319 = vld [vmem:[#allocation5 + $0x5a0] sm:$0xff]
    %v320 = vld [vmem:[#allocation5 + $0x5a8] sm:$0xff]
    %v321 = vld [vmem:[#allocation5 + $0x5b0] sm:$0xff]
    %v322 = vld [vmem:[#allocation5 + $0x5b8] sm:$0xff]
    %v323 = vld [vmem:[#allocation5 + $0x5c0] sm:$0xff]
    %v324 = vld [vmem:[#allocation5 + $0x5c8] sm:$0xff]
    %v325 = vld [vmem:[#allocation5 + $0x5d0] sm:$0xff]
    %v326 = vld [vmem:[#allocation5 + $0x5d8] sm:$0xff]
    %v327 = vld [vmem:[#allocation5 + $0x5e0] sm:$0xff]
    %v328 = vld [vmem:[#allocation5 + $0x5e8] sm:$0xff]
    %v329 = vld [vmem:[#allocation5 + $0x5f0] sm:$0xff]
    %v330 = vld [vmem:[#allocation5 + $0x5f8] sm:$0xff]
    %v331 = vld [vmem:[#allocation5 + $0x600] sm:$0xff]
    %v332 = vld [vmem:[#allocation5 + $0x608] sm:$0xff]
    %v333 = vld [vmem:[#allocation5 + $0x610] sm:$0xff]
    %v334 = vld [vmem:[#allocation5 + $0x618] sm:$0xff]
    %v335 = vld [vmem:[#allocation5 + $0x620] sm:$0xff]
    %v336 = vld [vmem:[#allocation5 + $0x628] sm:$0xff]
    %v337 = vld [vmem:[#allocation5 + $0x630] sm:$0xff]
    %v338 = vld [vmem:[#allocation5 + $0x638] sm:$0xff]
    %v339 = vld [vmem:[#allocation5 + $0x640] sm:$0xff]
    %v340 = vld [vmem:[#allocation5 + $0x648] sm:$0xff]
    %v341 = vld [vmem:[#allocation5 + $0x650] sm:$0xff]
    %v342 = vld [vmem:[#allocation5 + $0x658] sm:$0xff]
    %v343 = vld [vmem:[#allocation5 + $0x660] sm:$0xff]
    %v344 = vld [vmem:[#allocation5 + $0x668] sm:$0xff]
    %v345 = vld [vmem:[#allocation5 + $0x670] sm:$0xff]
    %v346 = vld [vmem:[#allocation5 + $0x678] sm:$0xff]
    %v347 = vld [vmem:[#allocation5 + $0x680] sm:$0xff]
    %v348 = vld [vmem:[#allocation5 + $0x688] sm:$0xff]
    %v349 = vld [vmem:[#allocation5 + $0x690] sm:$0xff]
    %v350 = vld [vmem:[#allocation5 + $0x698] sm:$0xff]
    %v351 = vld [vmem:[#allocation5 + $0x6a0] sm:$0xff]
    %v352 = vld [vmem:[#allocation5 + $0x6a8] sm:$0xff]
    %v353 = vld [vmem:[#allocation5 + $0x6b0] sm:$0xff]
    %v354 = vld [vmem:[#allocation5 + $0x6b8] sm:$0xff]
    %v355 = vld [vmem:[#allocation5 + $0x6c0] sm:$0xff]
    %v356 = vld [vmem:[#allocation5 + $0x6c8] sm:$0xff]
    %v357 = vld [vmem:[#allocation5 + $0x6d0] sm:$0xff]
    %v358 = vld [vmem:[#allocation5 + $0x6d8] sm:$0xff]
    %v359 = vld [vmem:[#allocation5 + $0x6e0] sm:$0xff]
    %v360 = vld [vmem:[#allocation5 + $0x6e8] sm:$0xff]
    %v361 = vld [vmem:[#allocation5 + $0x6f0] sm:$0xff]
    %v362 = vld [vmem:[#allocation5 + $0x6f8] sm:$0xff]
    %v363 = vld [vmem:[#allocation5 + $0x700] sm:$0xff]
    %v364 = vld [vmem:[#allocation5 + $0x708] sm:$0xff]
    %v365 = vld [vmem:[#allocation5 + $0x710] sm:$0xff]
    %v366 = vld [vmem:[#allocation5 + $0x718] sm:$0xff]
    %v367 = vld [vmem:[#allocation5 + $0x720] sm:$0xff]
    %v368 = vld [vmem:[#allocation5 + $0x728] sm:$0xff]
    %v369 = vld [vmem:[#allocation5 + $0x730] sm:$0xff]
    %v370 = vld [vmem:[#allocation5 + $0x738] sm:$0xff]
    %v371 = vld [vmem:[#allocation5 + $0x740] sm:$0xff]
    %v372 = vld [vmem:[#allocation5 + $0x748] sm:$0xff]
    %v373 = vld [vmem:[#allocation5 + $0x750] sm:$0xff]
    %v374 = vld [vmem:[#allocation5 + $0x758] sm:$0xff]
    %v375 = vld [vmem:[#allocation5 + $0x760] sm:$0xff]
    %v376 = vld [vmem:[#allocation5 + $0x768] sm:$0xff]
    %v377 = vld [vmem:[#allocation5 + $0x770] sm:$0xff]
    %v378 = vld [vmem:[#allocation5 + $0x778] sm:$0xff]
    %v379 = vld [vmem:[#allocation5 + $0x780] sm:$0xff]
    %v380 = vld [vmem:[#allocation5 + $0x788] sm:$0xff]
    %v381 = vld [vmem:[#allocation5 + $0x790] sm:$0xff]
    %v382 = vld [vmem:[#allocation5 + $0x798] sm:$0xff]
    %v383 = vld [vmem:[#allocation5 + $0x7a0] sm:$0xff]
    %v384 = vld [vmem:[#allocation5 + $0x7a8] sm:$0xff]
    %v385 = vld [vmem:[#allocation5 + $0x7b0] sm:$0xff]
    %v386 = vld [vmem:[#allocation5 + $0x7b8] sm:$0xff]
    %v387 = vld [vmem:[#allocation5 + $0x7c0] sm:$0xff]
    %v388 = vld [vmem:[#allocation5 + $0x7c8] sm:$0xff]
    %v389 = vld [vmem:[#allocation5 + $0x7d0] sm:$0xff]
    %v390 = vld [vmem:[#allocation5 + $0x7d8] sm:$0xff]
    %v391 = vld [vmem:[#allocation5 + $0x7e0] sm:$0xff]
    %v392 = vld [vmem:[#allocation5 + $0x7e8] sm:$0xff]
    %v393 = vld [vmem:[#allocation5 + $0x7f0] sm:$0xff]
    %v394 = vld [vmem:[#allocation5 + $0x7f8] sm:$0xff]
    %v395 = vld [vmem:[#allocation7] sm:$0xff]
    %v397 = vperm.slane %v395, 0
    %v398 = vperm.slane %v395, 1
    %v399 = vperm.slane %v395, 2
    %v400 = vperm.slane %v395, 3
    %v401 = vperm.slane %v395, 4
    %v402 = vperm.slane %v395, 5
    %v403 = vperm.slane %v395, 6
    %v404 = vperm.slane %v395, 7
    %vm417 = vcmask 1041409
    %v418 = vsel %vm417, %v131, %v117
    %v419 = vsel %vm417, %v138, %v124
    %422 = vmatpush.msra.mxu0 %v259
    %423 = vmatpush.msra.mxu0 %v251
    %424 = vmatpush.msra.mxu0 %v243
    %425 = vmatpush.msra.mxu0 %v235
    %426 = vmatpush.msra.mxu0 %v227
    %427 = vmatpush.msra.mxu0 %v219
    %428 = vmatpush.msra.mxu0 %v211
    %429 = vmatpush.msra.mxu0 %v203
    %430 = vmatpush.msra.mxu0 %v195
    %431 = vmatpush.msra.mxu0 %v187
    %432 = vmatpush.msra.mxu0 %v179
    %433 = vmatpush.msra.mxu0 %v171
    %434 = vmatpush.msra.mxu0 %v163
    %435 = vmatpush.msra.mxu0 %v155
    %436 = vmatpush.msra.mxu0 %v147
    %437 = vmatpush.msra.mxu0 %v139
    %438 = vmatmul.f32.gmra.mxu0 %v418
    %v439 = vpop.f32.mrf.mxu0
    %v440 = vadd.f32 %v397, %v439
    %441 = vdwg.mxu0
    %442 = vmatpush.msra.mxu0 %v387
    %443 = vmatpush.msra.mxu0 %v379
    %444 = vmatpush.msra.mxu0 %v371
    %445 = vmatpush.msra.mxu0 %v363
    %446 = vmatpush.msra.mxu0 %v355
    %447 = vmatpush.msra.mxu0 %v347
    %448 = vmatpush.msra.mxu0 %v339
    %449 = vmatpush.msra.mxu0 %v331
    %450 = vmatpush.msra.mxu0 %v323
    %451 = vmatpush.msra.mxu0 %v315
    %452 = vmatpush.msra.mxu0 %v307
    %453 = vmatpush.msra.mxu0 %v299
    %454 = vmatpush.msra.mxu0 %v291
    %455 = vmatpush.msra.mxu0 %v283
    %456 = vmatpush.msra.mxu0 %v275
    %457 = vmatpush.msra.mxu0 %v267
    %458 = vmatmul.f32.gmra.mxu0 %v419
    %v459 = vpop.f32.mrf.mxu0
    %v460 = vadd.f32 %v440, %v459
    %461 = vdwg.mxu0
    %462 = vmatpush.msra.mxu0 %v260
    %463 = vmatpush.msra.mxu0 %v252
    %464 = vmatpush.msra.mxu0 %v244
    %465 = vmatpush.msra.mxu0 %v236
    %466 = vmatpush.msra.mxu0 %v228
    %467 = vmatpush.msra.mxu0 %v220
    %468 = vmatpush.msra.mxu0 %v212
    %469 = vmatpush.msra.mxu0 %v204
    %470 = vmatpush.msra.mxu0 %v196
    %471 = vmatpush.msra.mxu0 %v188
    %472 = vmatpush.msra.mxu0 %v180
    %473 = vmatpush.msra.mxu0 %v172
    %474 = vmatpush.msra.mxu0 %v164
    %475 = vmatpush.msra.mxu0 %v156
    %476 = vmatpush.msra.mxu0 %v148
    %477 = vmatpush.msra.mxu0 %v140
    %478 = vmatmul.f32.gmra.mxu0 %v418
    %v479 = vpop.f32.mrf.mxu0
    %v480 = vadd.f32 %v398, %v479
    %481 = vdwg.mxu0
    %482 = vmatpush.msra.mxu0 %v388
    %483 = vmatpush.msra.mxu0 %v380
    %484 = vmatpush.msra.mxu0 %v372
    %485 = vmatpush.msra.mxu0 %v364
    %486 = vmatpush.msra.mxu0 %v356
    %487 = vmatpush.msra.mxu0 %v348
    %488 = vmatpush.msra.mxu0 %v340
    %489 = vmatpush.msra.mxu0 %v332
    %490 = vmatpush.msra.mxu0 %v324
    %491 = vmatpush.msra.mxu0 %v316
    %492 = vmatpush.msra.mxu0 %v308
    %493 = vmatpush.msra.mxu0 %v300
    %494 = vmatpush.msra.mxu0 %v292
    %495 = vmatpush.msra.mxu0 %v284
    %496 = vmatpush.msra.mxu0 %v276
    %497 = vmatpush.msra.mxu0 %v268
    %498 = vmatmul.f32.gmra.mxu0 %v419
    %v499 = vpop.f32.mrf.mxu0
    %v500 = vadd.f32 %v480, %v499
    %501 = vdwg.mxu0
    %502 = vmatpush.msra.mxu0 %v261
    %503 = vmatpush.msra.mxu0 %v253
    %504 = vmatpush.msra.mxu0 %v245
    %505 = vmatpush.msra.mxu0 %v237
    %506 = vmatpush.msra.mxu0 %v229
    %507 = vmatpush.msra.mxu0 %v221
    %508 = vmatpush.msra.mxu0 %v213
    %509 = vmatpush.msra.mxu0 %v205
    %510 = vmatpush.msra.mxu0 %v197
    %511 = vmatpush.msra.mxu0 %v189
    %512 = vmatpush.msra.mxu0 %v181
    %513 = vmatpush.msra.mxu0 %v173
    %514 = vmatpush.msra.mxu0 %v165
    %515 = vmatpush.msra.mxu0 %v157
    %516 = vmatpush.msra.mxu0 %v149
    %517 = vmatpush.msra.mxu0 %v141
    %518 = vmatmul.f32.gmra.mxu0 %v418
    %v519 = vpop.f32.mrf.mxu0
    %v520 = vadd.f32 %v399, %v519
    %521 = vdwg.mxu0
    %522 = vmatpush.msra.mxu0 %v389
    %523 = vmatpush.msra.mxu0 %v381
    %524 = vmatpush.msra.mxu0 %v373
    %525 = vmatpush.msra.mxu0 %v365
    %526 = vmatpush.msra.mxu0 %v357
    %527 = vmatpush.msra.mxu0 %v349
    %528 = vmatpush.msra.mxu0 %v341
    %529 = vmatpush.msra.mxu0 %v333
    %530 = vmatpush.msra.mxu0 %v325
    %531 = vmatpush.msra.mxu0 %v317
    %532 = vmatpush.msra.mxu0 %v309
    %533 = vmatpush.msra.mxu0 %v301
    %534 = vmatpush.msra.mxu0 %v293
    %535 = vmatpush.msra.mxu0 %v285
    %536 = vmatpush.msra.mxu0 %v277
    %537 = vmatpush.msra.mxu0 %v269
    %538 = vmatmul.f32.gmra.mxu0 %v419
    %v539 = vpop.f32.mrf.mxu0
    %v540 = vadd.f32 %v520, %v539
    %541 = vdwg.mxu0
    %542 = vmatpush.msra.mxu0 %v262
    %543 = vmatpush.msra.mxu0 %v254
    %544 = vmatpush.msra.mxu0 %v246
    %545 = vmatpush.msra.mxu0 %v238
    %546 = vmatpush.msra.mxu0 %v230
    %547 = vmatpush.msra.mxu0 %v222
    %548 = vmatpush.msra.mxu0 %v214
    %549 = vmatpush.msra.mxu0 %v206
    %550 = vmatpush.msra.mxu0 %v198
    %551 = vmatpush.msra.mxu0 %v190
    %552 = vmatpush.msra.mxu0 %v182
    %553 = vmatpush.msra.mxu0 %v174
    %554 = vmatpush.msra.mxu0 %v166
    %555 = vmatpush.msra.mxu0 %v158
    %556 = vmatpush.msra.mxu0 %v150
    %557 = vmatpush.msra.mxu0 %v142
    %558 = vmatmul.f32.gmra.mxu0 %v418
    %v559 = vpop.f32.mrf.mxu0
    %v560 = vadd.f32 %v400, %v559
    %561 = vdwg.mxu0
    %562 = vmatpush.msra.mxu0 %v390
    %563 = vmatpush.msra.mxu0 %v382
    %564 = vmatpush.msra.mxu0 %v374
    %565 = vmatpush.msra.mxu0 %v366
    %566 = vmatpush.msra.mxu0 %v358
    %567 = vmatpush.msra.mxu0 %v350
    %568 = vmatpush.msra.mxu0 %v342
    %569 = vmatpush.msra.mxu0 %v334
    %570 = vmatpush.msra.mxu0 %v326
    %571 = vmatpush.msra.mxu0 %v318
    %572 = vmatpush.msra.mxu0 %v310
    %573 = vmatpush.msra.mxu0 %v302
    %574 = vmatpush.msra.mxu0 %v294
    %575 = vmatpush.msra.mxu0 %v286
    %576 = vmatpush.msra.mxu0 %v278
    %577 = vmatpush.msra.mxu0 %v270
    %578 = vmatmul.f32.gmra.mxu0 %v419
    %v579 = vpop.f32.mrf.mxu0
    %v580 = vadd.f32 %v560, %v579
    %581 = vdwg.mxu0
    %582 = vmatpush.msra.mxu0 %v263
    %583 = vmatpush.msra.mxu0 %v255
    %584 = vmatpush.msra.mxu0 %v247
    %585 = vmatpush.msra.mxu0 %v239
    %586 = vmatpush.msra.mxu0 %v231
    %587 = vmatpush.msra.mxu0 %v223
    %588 = vmatpush.msra.mxu0 %v215
    %589 = vmatpush.msra.mxu0 %v207
    %590 = vmatpush.msra.mxu0 %v199
    %591 = vmatpush.msra.mxu0 %v191
    %592 = vmatpush.msra.mxu0 %v183
    %593 = vmatpush.msra.mxu0 %v175
    %594 = vmatpush.msra.mxu0 %v167
    %595 = vmatpush.msra.mxu0 %v159
    %596 = vmatpush.msra.mxu0 %v151
    %597 = vmatpush.msra.mxu0 %v143
    %598 = vmatmul.f32.gmra.mxu0 %v418
    %v599 = vpop.f32.mrf.mxu0
    %v600 = vadd.f32 %v401, %v599
    %601 = vdwg.mxu0
    %602 = vmatpush.msra.mxu0 %v391
    %603 = vmatpush.msra.mxu0 %v383
    %604 = vmatpush.msra.mxu0 %v375
    %605 = vmatpush.msra.mxu0 %v367
    %606 = vmatpush.msra.mxu0 %v359
    %607 = vmatpush.msra.mxu0 %v351
    %608 = vmatpush.msra.mxu0 %v343
    %609 = vmatpush.msra.mxu0 %v335
    %610 = vmatpush.msra.mxu0 %v327
    %611 = vmatpush.msra.mxu0 %v319
    %612 = vmatpush.msra.mxu0 %v311
    %613 = vmatpush.msra.mxu0 %v303
    %614 = vmatpush.msra.mxu0 %v295
    %615 = vmatpush.msra.mxu0 %v287
    %616 = vmatpush.msra.mxu0 %v279
    %617 = vmatpush.msra.mxu0 %v271
    %618 = vmatmul.f32.gmra.mxu0 %v419
    %v619 = vpop.f32.mrf.mxu0
    %v620 = vadd.f32 %v600, %v619
    %621 = vdwg.mxu0
    %622 = vmatpush.msra.mxu0 %v264
    %623 = vmatpush.msra.mxu0 %v256
    %624 = vmatpush.msra.mxu0 %v248
    %625 = vmatpush.msra.mxu0 %v240
    %626 = vmatpush.msra.mxu0 %v232
    %627 = vmatpush.msra.mxu0 %v224
    %628 = vmatpush.msra.mxu0 %v216
    %629 = vmatpush.msra.mxu0 %v208
    %630 = vmatpush.msra.mxu0 %v200
    %631 = vmatpush.msra.mxu0 %v192
    %632 = vmatpush.msra.mxu0 %v184
    %633 = vmatpush.msra.mxu0 %v176
    %634 = vmatpush.msra.mxu0 %v168
    %635 = vmatpush.msra.mxu0 %v160
    %636 = vmatpush.msra.mxu0 %v152
    %637 = vmatpush.msra.mxu0 %v144
    %638 = vmatmul.f32.gmra.mxu0 %v418
    %v639 = vpop.f32.mrf.mxu0
    %v640 = vadd.f32 %v402, %v639
    %641 = vdwg.mxu0
    %642 = vmatpush.msra.mxu0 %v392
    %643 = vmatpush.msra.mxu0 %v384
    %644 = vmatpush.msra.mxu0 %v376
    %645 = vmatpush.msra.mxu0 %v368
    %646 = vmatpush.msra.mxu0 %v360
    %647 = vmatpush.msra.mxu0 %v352
    %648 = vmatpush.msra.mxu0 %v344
    %649 = vmatpush.msra.mxu0 %v336
    %650 = vmatpush.msra.mxu0 %v328
    %651 = vmatpush.msra.mxu0 %v320
    %652 = vmatpush.msra.mxu0 %v312
    %653 = vmatpush.msra.mxu0 %v304
    %654 = vmatpush.msra.mxu0 %v296
    %655 = vmatpush.msra.mxu0 %v288
    %656 = vmatpush.msra.mxu0 %v280
    %657 = vmatpush.msra.mxu0 %v272
    %658 = vmatmul.f32.gmra.mxu0 %v419
    %v659 = vpop.f32.mrf.mxu0
    %v660 = vadd.f32 %v640, %v659
    %661 = vdwg.mxu0
    %662 = vmatpush.msra.mxu0 %v265
    %663 = vmatpush.msra.mxu0 %v257
    %664 = vmatpush.msra.mxu0 %v249
    %665 = vmatpush.msra.mxu0 %v241
    %666 = vmatpush.msra.mxu0 %v233
    %667 = vmatpush.msra.mxu0 %v225
    %668 = vmatpush.msra.mxu0 %v217
    %669 = vmatpush.msra.mxu0 %v209
    %670 = vmatpush.msra.mxu0 %v201
    %671 = vmatpush.msra.mxu0 %v193
    %672 = vmatpush.msra.mxu0 %v185
    %673 = vmatpush.msra.mxu0 %v177
    %674 = vmatpush.msra.mxu0 %v169
    %675 = vmatpush.msra.mxu0 %v161
    %676 = vmatpush.msra.mxu0 %v153
    %677 = vmatpush.msra.mxu0 %v145
    %678 = vmatmul.f32.gmra.mxu0 %v418
    %v679 = vpop.f32.mrf.mxu0
    %v680 = vadd.f32 %v403, %v679
    %681 = vdwg.mxu0
    %682 = vmatpush.msra.mxu0 %v393
    %683 = vmatpush.msra.mxu0 %v385
    %684 = vmatpush.msra.mxu0 %v377
    %685 = vmatpush.msra.mxu0 %v369
    %686 = vmatpush.msra.mxu0 %v361
    %687 = vmatpush.msra.mxu0 %v353
    %688 = vmatpush.msra.mxu0 %v345
    %689 = vmatpush.msra.mxu0 %v337
    %690 = vmatpush.msra.mxu0 %v329
    %691 = vmatpush.msra.mxu0 %v321
    %692 = vmatpush.msra.mxu0 %v313
    %693 = vmatpush.msra.mxu0 %v305
    %694 = vmatpush.msra.mxu0 %v297
    %695 = vmatpush.msra.mxu0 %v289
    %696 = vmatpush.msra.mxu0 %v281
    %697 = vmatpush.msra.mxu0 %v273
    %698 = vmatmul.f32.gmra.mxu0 %v419
    %v699 = vpop.f32.mrf.mxu0
    %v700 = vadd.f32 %v680, %v699
    %701 = vdwg.mxu0
    %702 = vmatpush.msra.mxu0 %v266
    %703 = vmatpush.msra.mxu0 %v258
    %704 = vmatpush.msra.mxu0 %v250
    %705 = vmatpush.msra.mxu0 %v242
    %706 = vmatpush.msra.mxu0 %v234
    %707 = vmatpush.msra.mxu0 %v226
    %708 = vmatpush.msra.mxu0 %v218
    %709 = vmatpush.msra.mxu0 %v210
    %710 = vmatpush.msra.mxu0 %v202
    %711 = vmatpush.msra.mxu0 %v194
    %712 = vmatpush.msra.mxu0 %v186
    %713 = vmatpush.msra.mxu0 %v178
    %714 = vmatpush.msra.mxu0 %v170
    %715 = vmatpush.msra.mxu0 %v162
    %716 = vmatpush.msra.mxu0 %v154
    %717 = vmatpush.msra.mxu0 %v146
    %718 = vmatmul.f32.gmra.mxu0 %v418
    %v719 = vpop.f32.mrf.mxu0
    %v720 = vadd.f32 %v404, %v719
    %721 = vdwg.mxu0
    %722 = vmatpush.msra.mxu0 %v394
    %723 = vmatpush.msra.mxu0 %v386
    %724 = vmatpush.msra.mxu0 %v378
    %725 = vmatpush.msra.mxu0 %v370
    %726 = vmatpush.msra.mxu0 %v362
    %727 = vmatpush.msra.mxu0 %v354
    %728 = vmatpush.msra.mxu0 %v346
    %729 = vmatpush.msra.mxu0 %v338
    %730 = vmatpush.msra.mxu0 %v330
    %731 = vmatpush.msra.mxu0 %v322
    %732 = vmatpush.msra.mxu0 %v314
    %733 = vmatpush.msra.mxu0 %v306
    %734 = vmatpush.msra.mxu0 %v298
    %735 = vmatpush.msra.mxu0 %v290
    %736 = vmatpush.msra.mxu0 %v282
    %737 = vmatpush.msra.mxu0 %v274
    %738 = vmatmul.f32.gmra.mxu0 %v419
    %v739 = vpop.f32.mrf.mxu0
    %v740 = vadd.f32 %v720, %v739
    %741 = vdwg.mxu0
    %v742 = vld [vmem:[#allocation8] sm:$0xff]
    %v743 = vld [vmem:[#allocation8 + $0x8] sm:$0xff]
    %v744 = vld [vmem:[#allocation8 + $0x10] sm:$0xff]
    %v745 = vld [vmem:[#allocation8 + $0x18] sm:$0xff]
    %v746 = vld [vmem:[#allocation8 + $0x20] sm:$0xff]
    %v747 = vld [vmem:[#allocation8 + $0x28] sm:$0xff]
    %v748 = vld [vmem:[#allocation8 + $0x30] sm:$0xff]
    %v749 = vld [vmem:[#allocation8 + $0x38] sm:$0xff]
    %v750 = vld [vmem:[#allocation8 + $0x40] sm:$0xff]
    %v751 = vld [vmem:[#allocation8 + $0x48] sm:$0xff]
    %v752 = vld [vmem:[#allocation8 + $0x50] sm:$0xff]
    %v753 = vld [vmem:[#allocation8 + $0x58] sm:$0xff]
    %v754 = vld [vmem:[#allocation8 + $0x60] sm:$0xff]
    %v755 = vld [vmem:[#allocation8 + $0x68] sm:$0xff]
    %v756 = vld [vmem:[#allocation8 + $0x70] sm:$0xff]
    %v757 = vld [vmem:[#allocation8 + $0x78] sm:$0xff]
    %v758 = vld [vmem:[#allocation8 + $0x80] sm:$0xff]
    %v759 = vld [vmem:[#allocation8 + $0x88] sm:$0xff]
    %v760 = vld [vmem:[#allocation8 + $0x90] sm:$0xff]
    %v761 = vld [vmem:[#allocation8 + $0x98] sm:$0xff]
    %v762 = vld [vmem:[#allocation8 + $0xa0] sm:$0xff]
    %v763 = vld [vmem:[#allocation8 + $0xa8] sm:$0xff]
    %v764 = vld [vmem:[#allocation8 + $0xb0] sm:$0xff]
    %v765 = vld [vmem:[#allocation8 + $0xb8] sm:$0xff]
    %v766 = vld [vmem:[#allocation8 + $0xc0] sm:$0xff]
    %v767 = vld [vmem:[#allocation8 + $0xc8] sm:$0xff]
    %v768 = vld [vmem:[#allocation8 + $0xd0] sm:$0xff]
    %v769 = vld [vmem:[#allocation8 + $0xd8] sm:$0xff]
    %v770 = vld [vmem:[#allocation8 + $0xe0] sm:$0xff]
    %v771 = vld [vmem:[#allocation8 + $0xe8] sm:$0xff]
    %v772 = vld [vmem:[#allocation8 + $0xf0] sm:$0xff]
    %v773 = vld [vmem:[#allocation8 + $0xf8] sm:$0xff]
    %v774 = vld [vmem:[#allocation10] sm:$0x3]
    %v776 = vperm.slane %v774, 0
    %v777 = vperm.slane %v774, 1
    %780 = vmatpush.msra.mxu0 %v772
    %781 = vmatpush.msra.mxu0 %v770
    %782 = vmatpush.msra.mxu0 %v768
    %783 = vmatpush.msra.mxu0 %v766
    %784 = vmatpush.msra.mxu0 %v764
    %785 = vmatpush.msra.mxu0 %v762
    %786 = vmatpush.msra.mxu0 %v760
    %787 = vmatpush.msra.mxu0 %v758
    %788 = vmatpush.msra.mxu0 %v756
    %789 = vmatpush.msra.mxu0 %v754
    %790 = vmatpush.msra.mxu0 %v752
    %791 = vmatpush.msra.mxu0 %v750
    %792 = vmatpush.msra.mxu0 %v748
    %793 = vmatpush.msra.mxu0 %v746
    %794 = vmatpush.msra.mxu0 %v744
    %795 = vmatpush.msra.mxu0 %v742
    %796 = vmatmul.f32.gmra.mxu0 %v460
    %v797 = vpop.f32.mrf.mxu0
    %v798 = vadd.f32 %v776, %v797
    %799 = vdwg.mxu0
    %800 = vmatpush.msra.mxu0 %v773
    %801 = vmatpush.msra.mxu0 %v771
    %802 = vmatpush.msra.mxu0 %v769
    %803 = vmatpush.msra.mxu0 %v767
    %804 = vmatpush.msra.mxu0 %v765
    %805 = vmatpush.msra.mxu0 %v763
    %806 = vmatpush.msra.mxu0 %v761
    %807 = vmatpush.msra.mxu0 %v759
    %808 = vmatpush.msra.mxu0 %v757
    %809 = vmatpush.msra.mxu0 %v755
    %810 = vmatpush.msra.mxu0 %v753
    %811 = vmatpush.msra.mxu0 %v751
    %812 = vmatpush.msra.mxu0 %v749
    %813 = vmatpush.msra.mxu0 %v747
    %814 = vmatpush.msra.mxu0 %v745
    %815 = vmatpush.msra.mxu0 %v743
    %816 = vmatmul.f32.gmra.mxu0 %v460
    %v817 = vpop.f32.mrf.mxu0
    %v818 = vadd.f32 %v777, %v817
    %819 = vdwg.mxu0
    %v822 = vrot.slane %v818, 6
    %vm823 = vcmask 1041408
    %v824 = vsel %vm823, %v798, %v822
    %826 = vst [vmem:[#allocation11] sm:$0xf] %v824
    %s827 = scalar_lea.vmem [#allocation8], 256
    %v828 = vld [vmem:[%s827] sm:$0xff]
    %v829 = vld [vmem:[%s827 + $0x8] sm:$0xff]
    %v830 = vld [vmem:[%s827 + $0x10] sm:$0xff]
    %v831 = vld [vmem:[%s827 + $0x18] sm:$0xff]
    %v832 = vld [vmem:[%s827 + $0x20] sm:$0xff]
    %v833 = vld [vmem:[%s827 + $0x28] sm:$0xff]
    %v834 = vld [vmem:[%s827 + $0x30] sm:$0xff]
    %v835 = vld [vmem:[%s827 + $0x38] sm:$0xff]
    %v836 = vld [vmem:[%s827 + $0x40] sm:$0xff]
    %v837 = vld [vmem:[%s827 + $0x48] sm:$0xff]
    %v838 = vld [vmem:[%s827 + $0x50] sm:$0xff]
    %v839 = vld [vmem:[%s827 + $0x58] sm:$0xff]
    %v840 = vld [vmem:[%s827 + $0x60] sm:$0xff]
    %v841 = vld [vmem:[%s827 + $0x68] sm:$0xff]
    %v842 = vld [vmem:[%s827 + $0x70] sm:$0xff]
    %v843 = vld [vmem:[%s827 + $0x78] sm:$0xff]
    %v844 = vld [vmem:[%s827 + $0x80] sm:$0xff]
    %v845 = vld [vmem:[%s827 + $0x88] sm:$0xff]
    %v846 = vld [vmem:[%s827 + $0x90] sm:$0xff]
    %v847 = vld [vmem:[%s827 + $0x98] sm:$0xff]
    %v848 = vld [vmem:[%s827 + $0xa0] sm:$0xff]
    %v849 = vld [vmem:[%s827 + $0xa8] sm:$0xff]
    %v850 = vld [vmem:[%s827 + $0xb0] sm:$0xff]
    %v851 = vld [vmem:[%s827 + $0xb8] sm:$0xff]
    %v852 = vld [vmem:[%s827 + $0xc0] sm:$0xff]
    %v853 = vld [vmem:[%s827 + $0xc8] sm:$0xff]
    %v854 = vld [vmem:[%s827 + $0xd0] sm:$0xff]
    %v855 = vld [vmem:[%s827 + $0xd8] sm:$0xff]
    %v856 = vld [vmem:[%s827 + $0xe0] sm:$0xff]
    %v857 = vld [vmem:[%s827 + $0xe8] sm:$0xff]
    %v858 = vld [vmem:[%s827 + $0xf0] sm:$0xff]
    %v859 = vld [vmem:[%s827 + $0xf8] sm:$0xff]
    %v860 = vld [vmem:[#allocation10 + $0x2] sm:$0x3]
    %v862 = vperm.slane %v860, 0
    %v863 = vperm.slane %v860, 1
    %866 = vmatpush.msra.mxu0 %v858
    %867 = vmatpush.msra.mxu0 %v856
    %868 = vmatpush.msra.mxu0 %v854
    %869 = vmatpush.msra.mxu0 %v852
    %870 = vmatpush.msra.mxu0 %v850
    %871 = vmatpush.msra.mxu0 %v848
    %872 = vmatpush.msra.mxu0 %v846
    %873 = vmatpush.msra.mxu0 %v844
    %874 = vmatpush.msra.mxu0 %v842
    %875 = vmatpush.msra.mxu0 %v840
    %876 = vmatpush.msra.mxu0 %v838
    %877 = vmatpush.msra.mxu0 %v836
    %878 = vmatpush.msra.mxu0 %v834
    %879 = vmatpush.msra.mxu0 %v832
    %880 = vmatpush.msra.mxu0 %v830
    %881 = vmatpush.msra.mxu0 %v828
    %882 = vmatmul.f32.gmra.mxu0 %v500
    %v883 = vpop.f32.mrf.mxu0
    %v884 = vadd.f32 %v862, %v883
    %885 = vdwg.mxu0
    %886 = vmatpush.msra.mxu0 %v859
    %887 = vmatpush.msra.mxu0 %v857
    %888 = vmatpush.msra.mxu0 %v855
    %889 = vmatpush.msra.mxu0 %v853
    %890 = vmatpush.msra.mxu0 %v851
    %891 = vmatpush.msra.mxu0 %v849
    %892 = vmatpush.msra.mxu0 %v847
    %893 = vmatpush.msra.mxu0 %v845
    %894 = vmatpush.msra.mxu0 %v843
    %895 = vmatpush.msra.mxu0 %v841
    %896 = vmatpush.msra.mxu0 %v839
    %897 = vmatpush.msra.mxu0 %v837
    %898 = vmatpush.msra.mxu0 %v835
    %899 = vmatpush.msra.mxu0 %v833
    %900 = vmatpush.msra.mxu0 %v831
    %901 = vmatpush.msra.mxu0 %v829
    %902 = vmatmul.f32.gmra.mxu0 %v500
    %v903 = vpop.f32.mrf.mxu0
    %v904 = vadd.f32 %v863, %v903
    %905 = vdwg.mxu0
    %v908 = vrot.slane %v904, 6
    %v909 = vsel %vm823, %v884, %v908
    %911 = vst [vmem:[#allocation11 + $0x4] sm:$0xf] %v909
    %s912 = scalar_lea.vmem [#allocation8], 512
    %v913 = vld [vmem:[%s912] sm:$0xff]
    %v914 = vld [vmem:[%s912 + $0x8] sm:$0xff]
    %v915 = vld [vmem:[%s912 + $0x10] sm:$0xff]
    %v916 = vld [vmem:[%s912 + $0x18] sm:$0xff]
    %v917 = vld [vmem:[%s912 + $0x20] sm:$0xff]
    %v918 = vld [vmem:[%s912 + $0x28] sm:$0xff]
    %v919 = vld [vmem:[%s912 + $0x30] sm:$0xff]
    %v920 = vld [vmem:[%s912 + $0x38] sm:$0xff]
    %v921 = vld [vmem:[%s912 + $0x40] sm:$0xff]
    %v922 = vld [vmem:[%s912 + $0x48] sm:$0xff]
    %v923 = vld [vmem:[%s912 + $0x50] sm:$0xff]
    %v924 = vld [vmem:[%s912 + $0x58] sm:$0xff]
    %v925 = vld [vmem:[%s912 + $0x60] sm:$0xff]
    %v926 = vld [vmem:[%s912 + $0x68] sm:$0xff]
    %v927 = vld [vmem:[%s912 + $0x70] sm:$0xff]
    %v928 = vld [vmem:[%s912 + $0x78] sm:$0xff]
    %v929 = vld [vmem:[%s912 + $0x80] sm:$0xff]
    %v930 = vld [vmem:[%s912 + $0x88] sm:$0xff]
    %v931 = vld [vmem:[%s912 + $0x90] sm:$0xff]
    %v932 = vld [vmem:[%s912 + $0x98] sm:$0xff]
    %v933 = vld [vmem:[%s912 + $0xa0] sm:$0xff]
    %v934 = vld [vmem:[%s912 + $0xa8] sm:$0xff]
    %v935 = vld [vmem:[%s912 + $0xb0] sm:$0xff]
    %v936 = vld [vmem:[%s912 + $0xb8] sm:$0xff]
    %v937 = vld [vmem:[%s912 + $0xc0] sm:$0xff]
    %v938 = vld [vmem:[%s912 + $0xc8] sm:$0xff]
    %v939 = vld [vmem:[%s912 + $0xd0] sm:$0xff]
    %v940 = vld [vmem:[%s912 + $0xd8] sm:$0xff]
    %v941 = vld [vmem:[%s912 + $0xe0] sm:$0xff]
    %v942 = vld [vmem:[%s912 + $0xe8] sm:$0xff]
    %v943 = vld [vmem:[%s912 + $0xf0] sm:$0xff]
    %v944 = vld [vmem:[%s912 + $0xf8] sm:$0xff]
    %v945 = vld [vmem:[#allocation10 + $0x4] sm:$0x3]
    %v947 = vperm.slane %v945, 0
    %v948 = vperm.slane %v945, 1
    %951 = vmatpush.msra.mxu0 %v943
    %952 = vmatpush.msra.mxu0 %v941
    %953 = vmatpush.msra.mxu0 %v939
    %954 = vmatpush.msra.mxu0 %v937
    %955 = vmatpush.msra.mxu0 %v935
    %956 = vmatpush.msra.mxu0 %v933
    %957 = vmatpush.msra.mxu0 %v931
    %958 = vmatpush.msra.mxu0 %v929
    %959 = vmatpush.msra.mxu0 %v927
    %960 = vmatpush.msra.mxu0 %v925
    %961 = vmatpush.msra.mxu0 %v923
    %962 = vmatpush.msra.mxu0 %v921
    %963 = vmatpush.msra.mxu0 %v919
    %964 = vmatpush.msra.mxu0 %v917
    %965 = vmatpush.msra.mxu0 %v915
    %966 = vmatpush.msra.mxu0 %v913
    %967 = vmatmul.f32.gmra.mxu0 %v540
    %v968 = vpop.f32.mrf.mxu0
    %v969 = vadd.f32 %v947, %v968
    %970 = vdwg.mxu0
    %971 = vmatpush.msra.mxu0 %v944
    %972 = vmatpush.msra.mxu0 %v942
    %973 = vmatpush.msra.mxu0 %v940
    %974 = vmatpush.msra.mxu0 %v938
    %975 = vmatpush.msra.mxu0 %v936
    %976 = vmatpush.msra.mxu0 %v934
    %977 = vmatpush.msra.mxu0 %v932
    %978 = vmatpush.msra.mxu0 %v930
    %979 = vmatpush.msra.mxu0 %v928
    %980 = vmatpush.msra.mxu0 %v926
    %981 = vmatpush.msra.mxu0 %v924
    %982 = vmatpush.msra.mxu0 %v922
    %983 = vmatpush.msra.mxu0 %v920
    %984 = vmatpush.msra.mxu0 %v918
    %985 = vmatpush.msra.mxu0 %v916
    %986 = vmatpush.msra.mxu0 %v914
    %987 = vmatmul.f32.gmra.mxu0 %v540
    %v988 = vpop.f32.mrf.mxu0
    %v989 = vadd.f32 %v948, %v988
    %990 = vdwg.mxu0
    %v993 = vrot.slane %v989, 6
    %v994 = vsel %vm823, %v969, %v993
    %996 = vst [vmem:[#allocation11 + $0x8] sm:$0xf] %v994
    %s997 = scalar_lea.vmem [#allocation8], 768
    %v998 = vld [vmem:[%s997] sm:$0xff]
    %v999 = vld [vmem:[%s997 + $0x8] sm:$0xff]
    %v1000 = vld [vmem:[%s997 + $0x10] sm:$0xff]
    %v1001 = vld [vmem:[%s997 + $0x18] sm:$0xff]
    %v1002 = vld [vmem:[%s997 + $0x20] sm:$0xff]
    %v1003 = vld [vmem:[%s997 + $0x28] sm:$0xff]
    %v1004 = vld [vmem:[%s997 + $0x30] sm:$0xff]
    %v1005 = vld [vmem:[%s997 + $0x38] sm:$0xff]
    %v1006 = vld [vmem:[%s997 + $0x40] sm:$0xff]
    %v1007 = vld [vmem:[%s997 + $0x48] sm:$0xff]
    %v1008 = vld [vmem:[%s997 + $0x50] sm:$0xff]
    %v1009 = vld [vmem:[%s997 + $0x58] sm:$0xff]
    %v1010 = vld [vmem:[%s997 + $0x60] sm:$0xff]
    %v1011 = vld [vmem:[%s997 + $0x68] sm:$0xff]
    %v1012 = vld [vmem:[%s997 + $0x70] sm:$0xff]
    %v1013 = vld [vmem:[%s997 + $0x78] sm:$0xff]
    %v1014 = vld [vmem:[%s997 + $0x80] sm:$0xff]
    %v1015 = vld [vmem:[%s997 + $0x88] sm:$0xff]
    %v1016 = vld [vmem:[%s997 + $0x90] sm:$0xff]
    %v1017 = vld [vmem:[%s997 + $0x98] sm:$0xff]
    %v1018 = vld [vmem:[%s997 + $0xa0] sm:$0xff]
    %v1019 = vld [vmem:[%s997 + $0xa8] sm:$0xff]
    %v1020 = vld [vmem:[%s997 + $0xb0] sm:$0xff]
    %v1021 = vld [vmem:[%s997 + $0xb8] sm:$0xff]
    %v1022 = vld [vmem:[%s997 + $0xc0] sm:$0xff]
    %v1023 = vld [vmem:[%s997 + $0xc8] sm:$0xff]
    %v1024 = vld [vmem:[%s997 + $0xd0] sm:$0xff]
    %v1025 = vld [vmem:[%s997 + $0xd8] sm:$0xff]
    %v1026 = vld [vmem:[%s997 + $0xe0] sm:$0xff]
    %v1027 = vld [vmem:[%s997 + $0xe8] sm:$0xff]
    %v1028 = vld [vmem:[%s997 + $0xf0] sm:$0xff]
    %v1029 = vld [vmem:[%s997 + $0xf8] sm:$0xff]
    %v1030 = vld [vmem:[#allocation10 + $0x6] sm:$0x3]
    %v1032 = vperm.slane %v1030, 0
    %v1033 = vperm.slane %v1030, 1
    %1036 = vmatpush.msra.mxu0 %v1028
    %1037 = vmatpush.msra.mxu0 %v1026
    %1038 = vmatpush.msra.mxu0 %v1024
    %1039 = vmatpush.msra.mxu0 %v1022
    %1040 = vmatpush.msra.mxu0 %v1020
    %1041 = vmatpush.msra.mxu0 %v1018
    %1042 = vmatpush.msra.mxu0 %v1016
    %1043 = vmatpush.msra.mxu0 %v1014
    %1044 = vmatpush.msra.mxu0 %v1012
    %1045 = vmatpush.msra.mxu0 %v1010
    %1046 = vmatpush.msra.mxu0 %v1008
    %1047 = vmatpush.msra.mxu0 %v1006
    %1048 = vmatpush.msra.mxu0 %v1004
    %1049 = vmatpush.msra.mxu0 %v1002
    %1050 = vmatpush.msra.mxu0 %v1000
    %1051 = vmatpush.msra.mxu0 %v998
    %1052 = vmatmul.f32.gmra.mxu0 %v580
    %v1053 = vpop.f32.mrf.mxu0
    %v1054 = vadd.f32 %v1032, %v1053
    %1055 = vdwg.mxu0
    %1056 = vmatpush.msra.mxu0 %v1029
    %1057 = vmatpush.msra.mxu0 %v1027
    %1058 = vmatpush.msra.mxu0 %v1025
    %1059 = vmatpush.msra.mxu0 %v1023
    %1060 = vmatpush.msra.mxu0 %v1021
    %1061 = vmatpush.msra.mxu0 %v1019
    %1062 = vmatpush.msra.mxu0 %v1017
    %1063 = vmatpush.msra.mxu0 %v1015
    %1064 = vmatpush.msra.mxu0 %v1013
    %1065 = vmatpush.msra.mxu0 %v1011
    %1066 = vmatpush.msra.mxu0 %v1009
    %1067 = vmatpush.msra.mxu0 %v1007
    %1068 = vmatpush.msra.mxu0 %v1005
    %1069 = vmatpush.msra.mxu0 %v1003
    %1070 = vmatpush.msra.mxu0 %v1001
    %1071 = vmatpush.msra.mxu0 %v999
    %1072 = vmatmul.f32.gmra.mxu0 %v580
    %v1073 = vpop.f32.mrf.mxu0
    %v1074 = vadd.f32 %v1033, %v1073
    %1075 = vdwg.mxu0
    %v1078 = vrot.slane %v1074, 6
    %v1079 = vsel %vm823, %v1054, %v1078
    %1081 = vst [vmem:[#allocation11 + $0xc] sm:$0xf] %v1079
    %s1082 = scalar_lea.vmem [#allocation8], 1024
    %v1083 = vld [vmem:[%s1082] sm:$0xff]
    %v1084 = vld [vmem:[%s1082 + $0x8] sm:$0xff]
    %v1085 = vld [vmem:[%s1082 + $0x10] sm:$0xff]
    %v1086 = vld [vmem:[%s1082 + $0x18] sm:$0xff]
    %v1087 = vld [vmem:[%s1082 + $0x20] sm:$0xff]
    %v1088 = vld [vmem:[%s1082 + $0x28] sm:$0xff]
    %v1089 = vld [vmem:[%s1082 + $0x30] sm:$0xff]
    %v1090 = vld [vmem:[%s1082 + $0x38] sm:$0xff]
    %v1091 = vld [vmem:[%s1082 + $0x40] sm:$0xff]
    %v1092 = vld [vmem:[%s1082 + $0x48] sm:$0xff]
    %v1093 = vld [vmem:[%s1082 + $0x50] sm:$0xff]
    %v1094 = vld [vmem:[%s1082 + $0x58] sm:$0xff]
    %v1095 = vld [vmem:[%s1082 + $0x60] sm:$0xff]
    %v1096 = vld [vmem:[%s1082 + $0x68] sm:$0xff]
    %v1097 = vld [vmem:[%s1082 + $0x70] sm:$0xff]
    %v1098 = vld [vmem:[%s1082 + $0x78] sm:$0xff]
    %v1099 = vld [vmem:[%s1082 + $0x80] sm:$0xff]
    %v1100 = vld [vmem:[%s1082 + $0x88] sm:$0xff]
    %v1101 = vld [vmem:[%s1082 + $0x90] sm:$0xff]
    %v1102 = vld [vmem:[%s1082 + $0x98] sm:$0xff]
    %v1103 = vld [vmem:[%s1082 + $0xa0] sm:$0xff]
    %v1104 = vld [vmem:[%s1082 + $0xa8] sm:$0xff]
    %v1105 = vld [vmem:[%s1082 + $0xb0] sm:$0xff]
    %v1106 = vld [vmem:[%s1082 + $0xb8] sm:$0xff]
    %v1107 = vld [vmem:[%s1082 + $0xc0] sm:$0xff]
    %v1108 = vld [vmem:[%s1082 + $0xc8] sm:$0xff]
    %v1109 = vld [vmem:[%s1082 + $0xd0] sm:$0xff]
    %v1110 = vld [vmem:[%s1082 + $0xd8] sm:$0xff]
    %v1111 = vld [vmem:[%s1082 + $0xe0] sm:$0xff]
    %v1112 = vld [vmem:[%s1082 + $0xe8] sm:$0xff]
    %v1113 = vld [vmem:[%s1082 + $0xf0] sm:$0xff]
    %v1114 = vld [vmem:[%s1082 + $0xf8] sm:$0xff]
    %v1115 = vld [vmem:[#allocation10 + $0x8] sm:$0x3]
    %v1117 = vperm.slane %v1115, 0
    %v1118 = vperm.slane %v1115, 1
    %1121 = vmatpush.msra.mxu0 %v1113
    %1122 = vmatpush.msra.mxu0 %v1111
    %1123 = vmatpush.msra.mxu0 %v1109
    %1124 = vmatpush.msra.mxu0 %v1107
    %1125 = vmatpush.msra.mxu0 %v1105
    %1126 = vmatpush.msra.mxu0 %v1103
    %1127 = vmatpush.msra.mxu0 %v1101
    %1128 = vmatpush.msra.mxu0 %v1099
    %1129 = vmatpush.msra.mxu0 %v1097
    %1130 = vmatpush.msra.mxu0 %v1095
    %1131 = vmatpush.msra.mxu0 %v1093
    %1132 = vmatpush.msra.mxu0 %v1091
    %1133 = vmatpush.msra.mxu0 %v1089
    %1134 = vmatpush.msra.mxu0 %v1087
    %1135 = vmatpush.msra.mxu0 %v1085
    %1136 = vmatpush.msra.mxu0 %v1083
    %1137 = vmatmul.f32.gmra.mxu0 %v620
    %v1138 = vpop.f32.mrf.mxu0
    %v1139 = vadd.f32 %v1117, %v1138
    %1140 = vdwg.mxu0
    %1141 = vmatpush.msra.mxu0 %v1114
    %1142 = vmatpush.msra.mxu0 %v1112
    %1143 = vmatpush.msra.mxu0 %v1110
    %1144 = vmatpush.msra.mxu0 %v1108
    %1145 = vmatpush.msra.mxu0 %v1106
    %1146 = vmatpush.msra.mxu0 %v1104
    %1147 = vmatpush.msra.mxu0 %v1102
    %1148 = vmatpush.msra.mxu0 %v1100
    %1149 = vmatpush.msra.mxu0 %v1098
    %1150 = vmatpush.msra.mxu0 %v1096
    %1151 = vmatpush.msra.mxu0 %v1094
    %1152 = vmatpush.msra.mxu0 %v1092
    %1153 = vmatpush.msra.mxu0 %v1090
    %1154 = vmatpush.msra.mxu0 %v1088
    %1155 = vmatpush.msra.mxu0 %v1086
    %1156 = vmatpush.msra.mxu0 %v1084
    %1157 = vmatmul.f32.gmra.mxu0 %v620
    %v1158 = vpop.f32.mrf.mxu0
    %v1159 = vadd.f32 %v1118, %v1158
    %1160 = vdwg.mxu0
    %v1163 = vrot.slane %v1159, 6
    %v1164 = vsel %vm823, %v1139, %v1163
    %1166 = vst [vmem:[#allocation11 + $0x10] sm:$0xf] %v1164
    %s1167 = scalar_lea.vmem [#allocation8], 1280
    %v1168 = vld [vmem:[%s1167] sm:$0xff]
    %v1169 = vld [vmem:[%s1167 + $0x8] sm:$0xff]
    %v1170 = vld [vmem:[%s1167 + $0x10] sm:$0xff]
    %v1171 = vld [vmem:[%s1167 + $0x18] sm:$0xff]
    %v1172 = vld [vmem:[%s1167 + $0x20] sm:$0xff]
    %v1173 = vld [vmem:[%s1167 + $0x28] sm:$0xff]
    %v1174 = vld [vmem:[%s1167 + $0x30] sm:$0xff]
    %v1175 = vld [vmem:[%s1167 + $0x38] sm:$0xff]
    %v1176 = vld [vmem:[%s1167 + $0x40] sm:$0xff]
    %v1177 = vld [vmem:[%s1167 + $0x48] sm:$0xff]
    %v1178 = vld [vmem:[%s1167 + $0x50] sm:$0xff]
    %v1179 = vld [vmem:[%s1167 + $0x58] sm:$0xff]
    %v1180 = vld [vmem:[%s1167 + $0x60] sm:$0xff]
    %v1181 = vld [vmem:[%s1167 + $0x68] sm:$0xff]
    %v1182 = vld [vmem:[%s1167 + $0x70] sm:$0xff]
    %v1183 = vld [vmem:[%s1167 + $0x78] sm:$0xff]
    %v1184 = vld [vmem:[%s1167 + $0x80] sm:$0xff]
    %v1185 = vld [vmem:[%s1167 + $0x88] sm:$0xff]
    %v1186 = vld [vmem:[%s1167 + $0x90] sm:$0xff]
    %v1187 = vld [vmem:[%s1167 + $0x98] sm:$0xff]
    %v1188 = vld [vmem:[%s1167 + $0xa0] sm:$0xff]
    %v1189 = vld [vmem:[%s1167 + $0xa8] sm:$0xff]
    %v1190 = vld [vmem:[%s1167 + $0xb0] sm:$0xff]
    %v1191 = vld [vmem:[%s1167 + $0xb8] sm:$0xff]
    %v1192 = vld [vmem:[%s1167 + $0xc0] sm:$0xff]
    %v1193 = vld [vmem:[%s1167 + $0xc8] sm:$0xff]
    %v1194 = vld [vmem:[%s1167 + $0xd0] sm:$0xff]
    %v1195 = vld [vmem:[%s1167 + $0xd8] sm:$0xff]
    %v1196 = vld [vmem:[%s1167 + $0xe0] sm:$0xff]
    %v1197 = vld [vmem:[%s1167 + $0xe8] sm:$0xff]
    %v1198 = vld [vmem:[%s1167 + $0xf0] sm:$0xff]
    %v1199 = vld [vmem:[%s1167 + $0xf8] sm:$0xff]
    %v1200 = vld [vmem:[#allocation10 + $0xa] sm:$0x3]
    %v1202 = vperm.slane %v1200, 0
    %v1203 = vperm.slane %v1200, 1
    %1206 = vmatpush.msra.mxu0 %v1198
    %1207 = vmatpush.msra.mxu0 %v1196
    %1208 = vmatpush.msra.mxu0 %v1194
    %1209 = vmatpush.msra.mxu0 %v1192
    %1210 = vmatpush.msra.mxu0 %v1190
    %1211 = vmatpush.msra.mxu0 %v1188
    %1212 = vmatpush.msra.mxu0 %v1186
    %1213 = vmatpush.msra.mxu0 %v1184
    %1214 = vmatpush.msra.mxu0 %v1182
    %1215 = vmatpush.msra.mxu0 %v1180
    %1216 = vmatpush.msra.mxu0 %v1178
    %1217 = vmatpush.msra.mxu0 %v1176
    %1218 = vmatpush.msra.mxu0 %v1174
    %1219 = vmatpush.msra.mxu0 %v1172
    %1220 = vmatpush.msra.mxu0 %v1170
    %1221 = vmatpush.msra.mxu0 %v1168
    %1222 = vmatmul.f32.gmra.mxu0 %v660
    %v1223 = vpop.f32.mrf.mxu0
    %v1224 = vadd.f32 %v1202, %v1223
    %1225 = vdwg.mxu0
    %1226 = vmatpush.msra.mxu0 %v1199
    %1227 = vmatpush.msra.mxu0 %v1197
    %1228 = vmatpush.msra.mxu0 %v1195
    %1229 = vmatpush.msra.mxu0 %v1193
    %1230 = vmatpush.msra.mxu0 %v1191
    %1231 = vmatpush.msra.mxu0 %v1189
    %1232 = vmatpush.msra.mxu0 %v1187
    %1233 = vmatpush.msra.mxu0 %v1185
    %1234 = vmatpush.msra.mxu0 %v1183
    %1235 = vmatpush.msra.mxu0 %v1181
    %1236 = vmatpush.msra.mxu0 %v1179
    %1237 = vmatpush.msra.mxu0 %v1177
    %1238 = vmatpush.msra.mxu0 %v1175
    %1239 = vmatpush.msra.mxu0 %v1173
    %1240 = vmatpush.msra.mxu0 %v1171
    %1241 = vmatpush.msra.mxu0 %v1169
    %1242 = vmatmul.f32.gmra.mxu0 %v660
    %v1243 = vpop.f32.mrf.mxu0
    %v1244 = vadd.f32 %v1203, %v1243
    %1245 = vdwg.mxu0
    %v1248 = vrot.slane %v1244, 6
    %v1249 = vsel %vm823, %v1224, %v1248
    %1251 = vst [vmem:[#allocation11 + $0x14] sm:$0xf] %v1249
    %s1252 = scalar_lea.vmem [#allocation8], 1536
    %v1253 = vld [vmem:[%s1252] sm:$0xff]
    %v1254 = vld [vmem:[%s1252 + $0x8] sm:$0xff]
    %v1255 = vld [vmem:[%s1252 + $0x10] sm:$0xff]
    %v1256 = vld [vmem:[%s1252 + $0x18] sm:$0xff]
    %v1257 = vld [vmem:[%s1252 + $0x20] sm:$0xff]
    %v1258 = vld [vmem:[%s1252 + $0x28] sm:$0xff]
    %v1259 = vld [vmem:[%s1252 + $0x30] sm:$0xff]
    %v1260 = vld [vmem:[%s1252 + $0x38] sm:$0xff]
    %v1261 = vld [vmem:[%s1252 + $0x40] sm:$0xff]
    %v1262 = vld [vmem:[%s1252 + $0x48] sm:$0xff]
    %v1263 = vld [vmem:[%s1252 + $0x50] sm:$0xff]
    %v1264 = vld [vmem:[%s1252 + $0x58] sm:$0xff]
    %v1265 = vld [vmem:[%s1252 + $0x60] sm:$0xff]
    %v1266 = vld [vmem:[%s1252 + $0x68] sm:$0xff]
    %v1267 = vld [vmem:[%s1252 + $0x70] sm:$0xff]
    %v1268 = vld [vmem:[%s1252 + $0x78] sm:$0xff]
    %v1269 = vld [vmem:[%s1252 + $0x80] sm:$0xff]
    %v1270 = vld [vmem:[%s1252 + $0x88] sm:$0xff]
    %v1271 = vld [vmem:[%s1252 + $0x90] sm:$0xff]
    %v1272 = vld [vmem:[%s1252 + $0x98] sm:$0xff]
    %v1273 = vld [vmem:[%s1252 + $0xa0] sm:$0xff]
    %v1274 = vld [vmem:[%s1252 + $0xa8] sm:$0xff]
    %v1275 = vld [vmem:[%s1252 + $0xb0] sm:$0xff]
    %v1276 = vld [vmem:[%s1252 + $0xb8] sm:$0xff]
    %v1277 = vld [vmem:[%s1252 + $0xc0] sm:$0xff]
    %v1278 = vld [vmem:[%s1252 + $0xc8] sm:$0xff]
    %v1279 = vld [vmem:[%s1252 + $0xd0] sm:$0xff]
    %v1280 = vld [vmem:[%s1252 + $0xd8] sm:$0xff]
    %v1281 = vld [vmem:[%s1252 + $0xe0] sm:$0xff]
    %v1282 = vld [vmem:[%s1252 + $0xe8] sm:$0xff]
    %v1283 = vld [vmem:[%s1252 + $0xf0] sm:$0xff]
    %v1284 = vld [vmem:[%s1252 + $0xf8] sm:$0xff]
    %v1285 = vld [vmem:[#allocation10 + $0xc] sm:$0x3]
    %v1287 = vperm.slane %v1285, 0
    %v1288 = vperm.slane %v1285, 1
    %1291 = vmatpush.msra.mxu0 %v1283
    %1292 = vmatpush.msra.mxu0 %v1281
    %1293 = vmatpush.msra.mxu0 %v1279
    %1294 = vmatpush.msra.mxu0 %v1277
    %1295 = vmatpush.msra.mxu0 %v1275
    %1296 = vmatpush.msra.mxu0 %v1273
    %1297 = vmatpush.msra.mxu0 %v1271
    %1298 = vmatpush.msra.mxu0 %v1269
    %1299 = vmatpush.msra.mxu0 %v1267
    %1300 = vmatpush.msra.mxu0 %v1265
    %1301 = vmatpush.msra.mxu0 %v1263
    %1302 = vmatpush.msra.mxu0 %v1261
    %1303 = vmatpush.msra.mxu0 %v1259
    %1304 = vmatpush.msra.mxu0 %v1257
    %1305 = vmatpush.msra.mxu0 %v1255
    %1306 = vmatpush.msra.mxu0 %v1253
    %1307 = vmatmul.f32.gmra.mxu0 %v700
    %v1308 = vpop.f32.mrf.mxu0
    %v1309 = vadd.f32 %v1287, %v1308
    %1310 = vdwg.mxu0
    %1311 = vmatpush.msra.mxu0 %v1284
    %1312 = vmatpush.msra.mxu0 %v1282
    %1313 = vmatpush.msra.mxu0 %v1280
    %1314 = vmatpush.msra.mxu0 %v1278
    %1315 = vmatpush.msra.mxu0 %v1276
    %1316 = vmatpush.msra.mxu0 %v1274
    %1317 = vmatpush.msra.mxu0 %v1272
    %1318 = vmatpush.msra.mxu0 %v1270
    %1319 = vmatpush.msra.mxu0 %v1268
    %1320 = vmatpush.msra.mxu0 %v1266
    %1321 = vmatpush.msra.mxu0 %v1264
    %1322 = vmatpush.msra.mxu0 %v1262
    %1323 = vmatpush.msra.mxu0 %v1260
    %1324 = vmatpush.msra.mxu0 %v1258
    %1325 = vmatpush.msra.mxu0 %v1256
    %1326 = vmatpush.msra.mxu0 %v1254
    %1327 = vmatmul.f32.gmra.mxu0 %v700
    %v1328 = vpop.f32.mrf.mxu0
    %v1329 = vadd.f32 %v1288, %v1328
    %1330 = vdwg.mxu0
    %v1333 = vrot.slane %v1329, 6
    %v1334 = vsel %vm823, %v1309, %v1333
    %1336 = vst [vmem:[#allocation11 + $0x18] sm:$0xf] %v1334
    %s1337 = scalar_lea.vmem [#allocation8], 1792
    %v1338 = vld [vmem:[%s1337] sm:$0xff]
    %v1339 = vld [vmem:[%s1337 + $0x8] sm:$0xff]
    %v1340 = vld [vmem:[%s1337 + $0x10] sm:$0xff]
    %v1341 = vld [vmem:[%s1337 + $0x18] sm:$0xff]
    %v1342 = vld [vmem:[%s1337 + $0x20] sm:$0xff]
    %v1343 = vld [vmem:[%s1337 + $0x28] sm:$0xff]
    %v1344 = vld [vmem:[%s1337 + $0x30] sm:$0xff]
    %v1345 = vld [vmem:[%s1337 + $0x38] sm:$0xff]
    %v1346 = vld [vmem:[%s1337 + $0x40] sm:$0xff]
    %v1347 = vld [vmem:[%s1337 + $0x48] sm:$0xff]
    %v1348 = vld [vmem:[%s1337 + $0x50] sm:$0xff]
    %v1349 = vld [vmem:[%s1337 + $0x58] sm:$0xff]
    %v1350 = vld [vmem:[%s1337 + $0x60] sm:$0xff]
    %v1351 = vld [vmem:[%s1337 + $0x68] sm:$0xff]
    %v1352 = vld [vmem:[%s1337 + $0x70] sm:$0xff]
    %v1353 = vld [vmem:[%s1337 + $0x78] sm:$0xff]
    %v1354 = vld [vmem:[%s1337 + $0x80] sm:$0xff]
    %v1355 = vld [vmem:[%s1337 + $0x88] sm:$0xff]
    %v1356 = vld [vmem:[%s1337 + $0x90] sm:$0xff]
    %v1357 = vld [vmem:[%s1337 + $0x98] sm:$0xff]
    %v1358 = vld [vmem:[%s1337 + $0xa0] sm:$0xff]
    %v1359 = vld [vmem:[%s1337 + $0xa8] sm:$0xff]
    %v1360 = vld [vmem:[%s1337 + $0xb0] sm:$0xff]
    %v1361 = vld [vmem:[%s1337 + $0xb8] sm:$0xff]
    %v1362 = vld [vmem:[%s1337 + $0xc0] sm:$0xff]
    %v1363 = vld [vmem:[%s1337 + $0xc8] sm:$0xff]
    %v1364 = vld [vmem:[%s1337 + $0xd0] sm:$0xff]
    %v1365 = vld [vmem:[%s1337 + $0xd8] sm:$0xff]
    %v1366 = vld [vmem:[%s1337 + $0xe0] sm:$0xff]
    %v1367 = vld [vmem:[%s1337 + $0xe8] sm:$0xff]
    %v1368 = vld [vmem:[%s1337 + $0xf0] sm:$0xff]
    %v1369 = vld [vmem:[%s1337 + $0xf8] sm:$0xff]
    %v1370 = vld [vmem:[#allocation10 + $0xe] sm:$0x3]
    %v1372 = vperm.slane %v1370, 0
    %v1373 = vperm.slane %v1370, 1
    %1376 = vmatpush.msra.mxu0 %v1368
    %1377 = vmatpush.msra.mxu0 %v1366
    %1378 = vmatpush.msra.mxu0 %v1364
    %1379 = vmatpush.msra.mxu0 %v1362
    %1380 = vmatpush.msra.mxu0 %v1360
    %1381 = vmatpush.msra.mxu0 %v1358
    %1382 = vmatpush.msra.mxu0 %v1356
    %1383 = vmatpush.msra.mxu0 %v1354
    %1384 = vmatpush.msra.mxu0 %v1352
    %1385 = vmatpush.msra.mxu0 %v1350
    %1386 = vmatpush.msra.mxu0 %v1348
    %1387 = vmatpush.msra.mxu0 %v1346
    %1388 = vmatpush.msra.mxu0 %v1344
    %1389 = vmatpush.msra.mxu0 %v1342
    %1390 = vmatpush.msra.mxu0 %v1340
    %1391 = vmatpush.msra.mxu0 %v1338
    %1392 = vmatmul.f32.gmra.mxu0 %v740
    %v1393 = vpop.f32.mrf.mxu0
    %v1394 = vadd.f32 %v1372, %v1393
    %1395 = vdwg.mxu0
    %1396 = vmatpush.msra.mxu0 %v1369
    %1397 = vmatpush.msra.mxu0 %v1367
    %1398 = vmatpush.msra.mxu0 %v1365
    %1399 = vmatpush.msra.mxu0 %v1363
    %1400 = vmatpush.msra.mxu0 %v1361
    %1401 = vmatpush.msra.mxu0 %v1359
    %1402 = vmatpush.msra.mxu0 %v1357
    %1403 = vmatpush.msra.mxu0 %v1355
    %1404 = vmatpush.msra.mxu0 %v1353
    %1405 = vmatpush.msra.mxu0 %v1351
    %1406 = vmatpush.msra.mxu0 %v1349
    %1407 = vmatpush.msra.mxu0 %v1347
    %1408 = vmatpush.msra.mxu0 %v1345
    %1409 = vmatpush.msra.mxu0 %v1343
    %1410 = vmatpush.msra.mxu0 %v1341
    %1411 = vmatpush.msra.mxu0 %v1339
    %1412 = vmatmul.f32.gmra.mxu0 %v740
    %v1413 = vpop.f32.mrf.mxu0
    %v1414 = vadd.f32 %v1373, %v1413
    %1415 = vdwg.mxu0
    %v1418 = vrot.slane %v1414, 6
    %v1419 = vsel %vm823, %v1394, %v1418
    %1421 = vst [vmem:[#allocation11 + $0x1c] sm:$0xf] %v1419
    // Predicated region
    $region42: #{tpu_custom_call.1} parent=1 // pred_check
      _
    $region43: #{tpu_custom_call.1} parent=1 // pred_check_branch
      %1423 = sbr.rel (0) target = $region45
    $region44: #{tpu_custom_call.1} parent=1 // pred_region
      %1425 = vsyncadd [#allocation4], 0
      %s1427 = sshll.u32 [#allocation11], 4
      %s1428 = int_to_ptr.vmem [resolvable:$true] %s1427
      %s1429 = sshll.u32 %s5, 4
      %s1430 = int_to_ptr.hbm [resolvable:$true] %s1429
      %1432 = dma.vmem_to_hbm [thread:$0]  %s1428, 512, %s1430, [#allocation4]
    $region45: #{tpu_custom_call.1} parent=1 // pred_fallthru
      _
    // Predicated region
    $region46: #{tpu_custom_call.1} parent=1 // pred_check
      _
    $region47: #{tpu_custom_call.1} parent=1 // pred_check_branch
      %1434 = sbr.rel (0) target = $region49
    $region48: #{tpu_custom_call.1} parent=1 // pred_region
      %1436 = dma.done [#allocation4], 512
    $region49: #{tpu_custom_call.1} parent=1 // pred_fallthru
      _
    %1437 = vsyncpa [#allocation3], 1
    %1438 = vsyncpa [#allocation6], 1
    %1439 = vsyncpa [#allocation9], 1
    %1440 = vsyncpa [#allocation4], 1

</llo_original>
